<compile_context>
chip_gen: v5e
topology: v5e:2x2
jax: 0.10.0
libtpu: 0.0.40
codegen_flags: <defaults>
</compile_context>

<pallas_src>
import jax
import jax.numpy as jnp
from jax import lax
from jax.experimental import pallas as pl
from jax.experimental.pallas import tpu as pltpu

NUM_CLASSES = 3
INPUT_SIZE = 124          # fixed by nn.LSTM(input_size=124, ...)
HIDDEN = 32               # small hidden size for the synthetic kernel
SEQ_LEN = 8
BATCH = 16                # multiple of 8 -> full sublane occupancy per block
K_DIM = 2                 # extra leading dim that forward() slices with x[:, 0]

# Fused gate layout (columns): [ i_f i_b | f_f f_b | o_f o_b | g_f g_b ]
# i.e. gate-major order [i, f, o, g], each gate 2H wide with fwd/bwd halves
# lining up with the fused hidden state h = [h_f | h_b].
_GATE_ORDER = (0, 1, 3, 2)   # source gates are stored [i, f, g, o] per direction


def evrnet_kernel(xcat_ref,   # (T, BB, 2F)  [x_t | x_{T-1-t}] per timestep
                  wih2_ref,   # (2F, 8H)     fused/permuted input weights (both dirs)
                  whh2_ref,   # (2H, 8H)     fused block-diagonal recurrent weights
                  b2_ref,     # (1, 8H)      fused (b_ih + b_hh) for both dirs
                  wfc_ref,    # (2H, C)
                  bfc_ref,    # (1, C)
                  out_ref):   # (BB, C)
    T, BB, F2 = xcat_ref.shape
    H2 = whh2_ref.shape[0]            # 2 * hidden

    # --- Hoisted input projection: one batched MXU matmul for all timesteps and
    # --- both directions, bias folded in (off the serial critical path).
    xcat = xcat_ref[...].reshape(T * BB, F2)
    xproj = (jnp.dot(xcat, wih2_ref[...], preferred_element_type=jnp.float32)
             + b2_ref[...])                                   # (T*BB, 8H)

    whh = whh2_ref[...]

    zeros = jnp.zeros((BB, H2), jnp.float32)
    h = zeros        # [h_fwd | h_bwd]
    c = zeros
    acc = zeros      # running sum of hidden states over time (both directions)

    # Fully unrolled fused recurrence: step s drives the forward cell with input
    # time s and the backward cell with input time T-1-s (layout prepared in xcat).
    for s in range(T):
        gates = xproj[s * BB:(s + 1) * BB, :] + jnp.dot(
            h, whh, preferred_element_type=jnp.float32)       # (BB, 8H)
        # Gate layout [i | f | o | g]: sigmoid on the first 3*2H columns only,
        # tanh on the last 2H columns only (cuts serial-path EUP work).
        sg = jax.nn.sigmoid(gates[:, :3 * H2])
        i_all = sg[:, 0 * H2:1 * H2]
        f_all = sg[:, 1 * H2:2 * H2]
        o_all = sg[:, 2 * H2:3 * H2]
        g_all = jnp.tanh(gates[:, 3 * H2:4 * H2])
        c = f_all * c + i_all * g_all
        h = o_all * jnp.tanh(c)
        acc = acc + h

    # AdaptiveAvgPool1d(1) over time; fwd/bwd halves are already contiguous in acc,
    # so no concatenate is needed before the final Linear layer.
    avg = acc * (1.0 / T)                                      # (BB, 2H)
    logits = jnp.dot(avg, wfc_ref[...],
                     preferred_element_type=jnp.float32) + bfc_ref[...]
    out_ref[...] = logits.astype(out_ref.dtype)


def _num_tensorcores():
    """Best-effort TensorCore-per-chip count (v7x has 2; v5e/v6e have 1)."""
    try:
        kind = (jax.devices()[0].device_kind or "").lower()
    except Exception:
        return 1
    return 2 if "v7" in kind else 1


def evrnet_forward(x, packed, *, hidden=HIDDEN, batch_block=None):
    """x: (B, K, 124, T) float32, like the PyTorch module's input."""
    B, _, F, T = x.shape
    C = NUM_CLASSES
    H2 = 2 * hidden
    G = 4 * H2

    # Single host-side transpose to time-major, then pair each timestep with its
    # time-reversed counterpart so one matmul covers both LSTM directions.
    x_tm = jnp.transpose(x[:, 0], (2, 0, 1))                   # (T, B, F)
    xcat = jnp.concatenate([x_tm, x_tm[::-1]], axis=-1)        # (T, B, 2F)
    F2 = xcat.shape[-1]

    # Generation-aware batch tiling: whole batch per TensorCore.  On 1-TC chips
    # (v5e/v6e) this gives grid=(1,) and a single serial recurrence; on v7x the
    # batch splits one block per core and runs the recurrences concurrently.
    if batch_block is not None:
        bb = batch_block if (B % batch_block == 0) else B
    else:
        bb = B
        n_tc = _num_tensorcores()
        if n_tc > 1 and B % n_tc == 0:
            cand = B // n_tc
            if cand % 8 == 0:       # keep the (8,128) sublane constraint satisfied
                bb = cand
    grid = (B // bb,)

    out = pl.pallas_call(
        evrnet_kernel,
        out_shape=jax.ShapeDtypeStruct((B, C), jnp.float32),
        grid=grid,
        in_specs=[
            pl.BlockSpec((T, bb, F2), lambda i: (0, i, 0)),
            pl.BlockSpec((F2, G), lambda i: (0, 0)),
            pl.BlockSpec((H2, G), lambda i: (0, 0)),
            pl.BlockSpec((1, G), lambda i: (0, 0)),
            pl.BlockSpec((H2, C), lambda i: (0, 0)),
            pl.BlockSpec((1, C), lambda i: (0, 0)),
        ],
        out_specs=pl.BlockSpec((bb, C), lambda i: (i, 0)),
        compiler_params=pltpu.CompilerParams(
            dimension_semantics=("parallel",)),
    )(xcat, packed["wih2"], packed["whh2"], packed["b2"],
      packed["wfc"], packed["bfc"])
    return out


def init_params(key, hidden=HIDDEN, input_size=INPUT_SIZE, num_classes=NUM_CLASSES):
    """Per-direction parameters (PyTorch-style U(-1/sqrt(H), 1/sqrt(H)) init),
    stored pre-transposed: (in_dim, 4H) with gate order [i, f, g, o]."""
    k = 1.0 / jnp.sqrt(jnp.float32(hidden))
    keys = jax.random.split(key, 10)

    def u(kk, shape):
        return jax.random.uniform(kk, shape, jnp.float32, minval=-k, maxval=k)

    H, F, C = hidden, input_size, num_classes
    return {
        "wih_f": u(keys[0], (F, 4 * H)),
        "whh_f": u(keys[1], (H, 4 * H)),
        "b_f":   u(keys[2], (1, 4 * H)) + u(keys[3], (1, 4 * H)),   # b_ih + b_hh
        "wih_b": u(keys[4], (F, 4 * H)),
        "whh_b": u(keys[5], (H, 4 * H)),
        "b_b":   u(keys[6], (1, 4 * H)) + u(keys[7], (1, 4 * H)),
        "wfc":   u(keys[8], (2 * H, C)),
        "bfc":   u(keys[9], (1, C)),
    }


def pack_params(params, hidden=HIDDEN, input_size=INPUT_SIZE):
    """Build the fused / gate-permuted weights consumed by the kernel.

    Fused gate layout (8H columns, gate-major [i, f, o, g], direction-minor):
        [ i_f i_b | f_f f_b | o_f o_b | g_f g_b ]   (each block H wide)
    so sigmoid covers the first 3*2H columns and tanh the last 2H, and every
    gate's fwd/bwd halves line up with the fused hidden state h = [h_f | h_b].
    """
    H, F = hidden, input_size

    def gate_permute(w_f, w_b):
        cols = []
        for g in _GATE_ORDER:
            cols.append(w_f[..., g * H:(g + 1) * H])
            cols.append(w_b[..., g * H:(g + 1) * H])
        return jnp.concatenate(cols, axis=-1)

    zF = jnp.zeros((F, 4 * H), jnp.float32)
    zH = jnp.zeros((H, 4 * H), jnp.float32)

    # Input weights act on xcat rows [x_t | x_{T-1-t}]: fwd weights in rows 0:F,
    # bwd weights in rows F:2F (zeros elsewhere).
    wih_f_pad = jnp.concatenate([params["wih_f"], zF], axis=0)   # (2F, 4H)
    wih_b_pad = jnp.concatenate([zF, params["wih_b"]], axis=0)   # (2F, 4H)
    wih2 = gate_permute(wih_f_pad, wih_b_pad)                    # (2F, 8H)

    # Recurrent weights: per-gate block diagonal over [h_f | h_b].
    whh_f_pad = jnp.concatenate([params["whh_f"], zH], axis=0)   # (2H, 4H)
    whh_b_pad = jnp.concatenate([zH, params["whh_b"]], axis=0)   # (2H, 4H)
    whh2 = gate_permute(whh_f_pad, whh_b_pad)                    # (2H, 8H)

    b2 = gate_permute(params["b_f"], params["b_b"])              # (1, 8H)

    return {
        "wih2": wih2,
        "whh2": whh2,
        "b2": b2,
        "wfc": params["wfc"],
        "bfc": params["bfc"],
    }


def evrnet_reference(x, params, hidden=HIDDEN):
    """Pure-JAX reference of the same forward pass (per-direction scan) for a
    correctness check that is independent of the fused-weight packing."""
    H = hidden
    x_seq = jnp.transpose(x[:, 0], (0, 2, 1))        # (B, T, F)
    B, T, _ = x_seq.shape

    def run_dir(wih, whh, b, reverse):
        xs = jnp.transpose(x_seq, (1, 0, 2))         # (T, B, F)
        if reverse:
            xs = xs[::-1]

        def step(carry, x_t):
            h, c = carry
            gates = x_t @ wih + h @ whh + b
            i = jax.nn.sigmoid(gates[:, 0 * H:1 * H])
            f = jax.nn.sigmoid(gates[:, 1 * H:2 * H])
            g = jnp.tanh(gates[:, 2 * H:3 * H])
            o = jax.nn.sigmoid(gates[:, 3 * H:4 * H])
            c = f * c + i * g
            h = o * jnp.tanh(c)
            return (h, c), h

        z = jnp.zeros((B, H), jnp.float32)
        _, hs = lax.scan(step, (z, z), xs)           # (T, B, H)
        return hs

    hs_f = run_dir(params["wih_f"], params["whh_f"], params["b_f"], False)
    hs_b = run_dir(params["wih_b"], params["whh_b"], params["b_b"], True)
    avg = jnp.concatenate([hs_f.mean(axis=0), hs_b.mean(axis=0)], axis=-1)
    return avg @ params["wfc"] + params["bfc"]


if __name__ == "__main__":
    key = jax.random.PRNGKey(0)
    k_x, k_p = jax.random.split(key)

    x = jax.random.normal(k_x, (BATCH, K_DIM, INPUT_SIZE, SEQ_LEN), jnp.float32)
    params = init_params(k_p)
    packed = pack_params(params)

    out = evrnet_forward(x, packed)
    out = jax.block_until_ready(out)

    ref = jax.block_until_ready(evrnet_reference(x, params))
    assert out.shape == (BATCH, NUM_CLASSES)
    assert jnp.allclose(out, ref, rtol=1e-4, atol=1e-4), (out, ref)

    print("KERNEL_OK")
</pallas_src>

<mosaic_0001>
module attributes {stable_mosaic.version = 11 : i64} {
  func.func @evrnet_kernel(%arg0: i32, %arg1: memref<8x16x248xf32, #tpu.memory_space<vmem>>, %arg2: memref<248x256xf32, #tpu.memory_space<vmem>>, %arg3: memref<64x256xf32, #tpu.memory_space<vmem>>, %arg4: memref<1x256xf32, #tpu.memory_space<vmem>>, %arg5: memref<64x3xf32, #tpu.memory_space<vmem>>, %arg6: memref<1x3xf32, #tpu.memory_space<vmem>>, %arg7: memref<16x3xf32, #tpu.memory_space<vmem>>) attributes {dimension_semantics = [#tpu.dimension_semantics<parallel>], iteration_bounds = array<i64: 1>, scalar_prefetch = 0 : i64, scratch_operands = 0 : i64, tpu.core_type = #tpu.core_type<tc>, window_params = [{transform_indices = @transform_0, window_bounds = array<i64: 8, 16, 248>}, {pipeline_mode = #tpu.pipeline_mode<synchronous>, transform_indices = @transform_1, window_bounds = array<i64: 248, 256>}, {pipeline_mode = #tpu.pipeline_mode<synchronous>, transform_indices = @transform_2, window_bounds = array<i64: 64, 256>}, {pipeline_mode = #tpu.pipeline_mode<synchronous>, transform_indices = @transform_3, window_bounds = array<i64: 1, 256>}, {pipeline_mode = #tpu.pipeline_mode<synchronous>, transform_indices = @transform_4, window_bounds = array<i64: 64, 3>}, {pipeline_mode = #tpu.pipeline_mode<synchronous>, transform_indices = @transform_5, window_bounds = array<i64: 1, 3>}, {transform_indices = @transform_6, window_bounds = array<i64: 16, 3>}]} {
    %c0 = arith.constant 0 : index
    %c0_0 = arith.constant 0 : index
    %c0_1 = arith.constant 0 : index
    %0 = vector.load %arg1[%c0, %c0_0, %c0_1] : memref<8x16x248xf32, #tpu.memory_space<vmem>>, vector<8x16x248xf32>
    %1 = vector.shape_cast %0 : vector<8x16x248xf32> to vector<128x248xf32>
    %c0_2 = arith.constant 0 : index
    %c0_3 = arith.constant 0 : index
    %2 = vector.load %arg2[%c0_2, %c0_3] : memref<248x256xf32, #tpu.memory_space<vmem>>, vector<248x256xf32>
    %cst = arith.constant dense<0.000000e+00> : vector<128x256xf32>
    %3 = tpu.matmul %1, %2, %cst {dimension_numbers = #tpu.dot_dimension_numbers<[1], [0], [0], [1], [0, 0, 1, 1], [], []>} : vector<128x248xf32>, vector<248x256xf32>, vector<128x256xf32> -> vector<128x256xf32>
    %c0_4 = arith.constant 0 : index
    %c0_5 = arith.constant 0 : index
    %4 = vector.load %arg4[%c0_4, %c0_5] : memref<1x256xf32, #tpu.memory_space<vmem>>, vector<1x256xf32>
    %5 = vector.broadcast %4 : vector<1x256xf32> to vector<128x256xf32>
    %6 = arith.addf %3, %5 : vector<128x256xf32>
    %c0_6 = arith.constant 0 : index
    %c0_7 = arith.constant 0 : index
    %7 = vector.load %arg3[%c0_6, %c0_7] : memref<64x256xf32, #tpu.memory_space<vmem>>, vector<64x256xf32>
    %cst_8 = arith.constant 0.000000e+00 : f32
    %8 = vector.broadcast %cst_8 : f32 to vector<16x64xf32>
    %9 = vector.extract_strided_slice %6 {offsets = [0, 0], sizes = [16, 256], strides = [1, 1]} : vector<128x256xf32> to vector<16x256xf32>
    %cst_9 = arith.constant dense<0.000000e+00> : vector<16x256xf32>
    %10 = tpu.matmul %8, %7, %cst_9 {dimension_numbers = #tpu.dot_dimension_numbers<[1], [0], [0], [1], [0, 0, 1, 1], [], []>} : vector<16x64xf32>, vector<64x256xf32>, vector<16x256xf32> -> vector<16x256xf32>
    %11 = arith.addf %9, %10 : vector<16x256xf32>
    %12 = vector.extract_strided_slice %11 {offsets = [0, 0], sizes = [16, 192], strides = [1, 1]} : vector<16x256xf32> to vector<16x192xf32>
    %13 = arith.negf %12 : vector<16x192xf32>
    %14 = math.exp %13 : vector<16x192xf32>
    %cst_10 = arith.constant 1.000000e+00 : f32
    %15 = vector.broadcast %cst_10 : f32 to vector<16x192xf32>
    %16 = arith.addf %15, %14 : vector<16x192xf32>
    %17 = arith.divf %15, %16 : vector<16x192xf32>
    %18 = vector.extract_strided_slice %17 {offsets = [0, 0], sizes = [16, 64], strides = [1, 1]} : vector<16x192xf32> to vector<16x64xf32>
    %19 = vector.extract_strided_slice %17 {offsets = [0, 64], sizes = [16, 64], strides = [1, 1]} : vector<16x192xf32> to vector<16x64xf32>
    %20 = vector.extract_strided_slice %17 {offsets = [0, 128], sizes = [16, 64], strides = [1, 1]} : vector<16x192xf32> to vector<16x64xf32>
    %21 = vector.extract_strided_slice %11 {offsets = [0, 192], sizes = [16, 64], strides = [1, 1]} : vector<16x256xf32> to vector<16x64xf32>
    %22 = math.tanh %21 : vector<16x64xf32>
    %23 = arith.mulf %19, %8 : vector<16x64xf32>
    %24 = arith.mulf %18, %22 : vector<16x64xf32>
    %25 = arith.addf %23, %24 : vector<16x64xf32>
    %26 = math.tanh %25 : vector<16x64xf32>
    %27 = arith.mulf %20, %26 : vector<16x64xf32>
    %28 = arith.addf %8, %27 : vector<16x64xf32>
    %29 = vector.extract_strided_slice %6 {offsets = [16, 0], sizes = [16, 256], strides = [1, 1]} : vector<128x256xf32> to vector<16x256xf32>
    %cst_11 = arith.constant dense<0.000000e+00> : vector<16x256xf32>
    %30 = tpu.matmul %27, %7, %cst_11 {dimension_numbers = #tpu.dot_dimension_numbers<[1], [0], [0], [1], [0, 0, 1, 1], [], []>} : vector<16x64xf32>, vector<64x256xf32>, vector<16x256xf32> -> vector<16x256xf32>
    %31 = arith.addf %29, %30 : vector<16x256xf32>
    %32 = vector.extract_strided_slice %31 {offsets = [0, 0], sizes = [16, 192], strides = [1, 1]} : vector<16x256xf32> to vector<16x192xf32>
    %33 = arith.negf %32 : vector<16x192xf32>
    %34 = math.exp %33 : vector<16x192xf32>
    %cst_12 = arith.constant 1.000000e+00 : f32
    %35 = vector.broadcast %cst_12 : f32 to vector<16x192xf32>
    %36 = arith.addf %35, %34 : vector<16x192xf32>
    %37 = arith.divf %35, %36 : vector<16x192xf32>
    %38 = vector.extract_strided_slice %37 {offsets = [0, 0], sizes = [16, 64], strides = [1, 1]} : vector<16x192xf32> to vector<16x64xf32>
    %39 = vector.extract_strided_slice %37 {offsets = [0, 64], sizes = [16, 64], strides = [1, 1]} : vector<16x192xf32> to vector<16x64xf32>
    %40 = vector.extract_strided_slice %37 {offsets = [0, 128], sizes = [16, 64], strides = [1, 1]} : vector<16x192xf32> to vector<16x64xf32>
    %41 = vector.extract_strided_slice %31 {offsets = [0, 192], sizes = [16, 64], strides = [1, 1]} : vector<16x256xf32> to vector<16x64xf32>
    %42 = math.tanh %41 : vector<16x64xf32>
    %43 = arith.mulf %39, %25 : vector<16x64xf32>
    %44 = arith.mulf %38, %42 : vector<16x64xf32>
    %45 = arith.addf %43, %44 : vector<16x64xf32>
    %46 = math.tanh %45 : vector<16x64xf32>
    %47 = arith.mulf %40, %46 : vector<16x64xf32>
    %48 = arith.addf %28, %47 : vector<16x64xf32>
    %49 = vector.extract_strided_slice %6 {offsets = [32, 0], sizes = [16, 256], strides = [1, 1]} : vector<128x256xf32> to vector<16x256xf32>
    %cst_13 = arith.constant dense<0.000000e+00> : vector<16x256xf32>
    %50 = tpu.matmul %47, %7, %cst_13 {dimension_numbers = #tpu.dot_dimension_numbers<[1], [0], [0], [1], [0, 0, 1, 1], [], []>} : vector<16x64xf32>, vector<64x256xf32>, vector<16x256xf32> -> vector<16x256xf32>
    %51 = arith.addf %49, %50 : vector<16x256xf32>
    %52 = vector.extract_strided_slice %51 {offsets = [0, 0], sizes = [16, 192], strides = [1, 1]} : vector<16x256xf32> to vector<16x192xf32>
    %53 = arith.negf %52 : vector<16x192xf32>
    %54 = math.exp %53 : vector<16x192xf32>
    %cst_14 = arith.constant 1.000000e+00 : f32
    %55 = vector.broadcast %cst_14 : f32 to vector<16x192xf32>
    %56 = arith.addf %55, %54 : vector<16x192xf32>
    %57 = arith.divf %55, %56 : vector<16x192xf32>
    %58 = vector.extract_strided_slice %57 {offsets = [0, 0], sizes = [16, 64], strides = [1, 1]} : vector<16x192xf32> to vector<16x64xf32>
    %59 = vector.extract_strided_slice %57 {offsets = [0, 64], sizes = [16, 64], strides = [1, 1]} : vector<16x192xf32> to vector<16x64xf32>
    %60 = vector.extract_strided_slice %57 {offsets = [0, 128], sizes = [16, 64], strides = [1, 1]} : vector<16x192xf32> to vector<16x64xf32>
    %61 = vector.extract_strided_slice %51 {offsets = [0, 192], sizes = [16, 64], strides = [1, 1]} : vector<16x256xf32> to vector<16x64xf32>
    %62 = math.tanh %61 : vector<16x64xf32>
    %63 = arith.mulf %59, %45 : vector<16x64xf32>
    %64 = arith.mulf %58, %62 : vector<16x64xf32>
    %65 = arith.addf %63, %64 : vector<16x64xf32>
    %66 = math.tanh %65 : vector<16x64xf32>
    %67 = arith.mulf %60, %66 : vector<16x64xf32>
    %68 = arith.addf %48, %67 : vector<16x64xf32>
    %69 = vector.extract_strided_slice %6 {offsets = [48, 0], sizes = [16, 256], strides = [1, 1]} : vector<128x256xf32> to vector<16x256xf32>
    %cst_15 = arith.constant dense<0.000000e+00> : vector<16x256xf32>
    %70 = tpu.matmul %67, %7, %cst_15 {dimension_numbers = #tpu.dot_dimension_numbers<[1], [0], [0], [1], [0, 0, 1, 1], [], []>} : vector<16x64xf32>, vector<64x256xf32>, vector<16x256xf32> -> vector<16x256xf32>
    %71 = arith.addf %69, %70 : vector<16x256xf32>
    %72 = vector.extract_strided_slice %71 {offsets = [0, 0], sizes = [16, 192], strides = [1, 1]} : vector<16x256xf32> to vector<16x192xf32>
    %73 = arith.negf %72 : vector<16x192xf32>
    %74 = math.exp %73 : vector<16x192xf32>
    %cst_16 = arith.constant 1.000000e+00 : f32
    %75 = vector.broadcast %cst_16 : f32 to vector<16x192xf32>
    %76 = arith.addf %75, %74 : vector<16x192xf32>
    %77 = arith.divf %75, %76 : vector<16x192xf32>
    %78 = vector.extract_strided_slice %77 {offsets = [0, 0], sizes = [16, 64], strides = [1, 1]} : vector<16x192xf32> to vector<16x64xf32>
    %79 = vector.extract_strided_slice %77 {offsets = [0, 64], sizes = [16, 64], strides = [1, 1]} : vector<16x192xf32> to vector<16x64xf32>
    %80 = vector.extract_strided_slice %77 {offsets = [0, 128], sizes = [16, 64], strides = [1, 1]} : vector<16x192xf32> to vector<16x64xf32>
    %81 = vector.extract_strided_slice %71 {offsets = [0, 192], sizes = [16, 64], strides = [1, 1]} : vector<16x256xf32> to vector<16x64xf32>
    %82 = math.tanh %81 : vector<16x64xf32>
    %83 = arith.mulf %79, %65 : vector<16x64xf32>
    %84 = arith.mulf %78, %82 : vector<16x64xf32>
    %85 = arith.addf %83, %84 : vector<16x64xf32>
    %86 = math.tanh %85 : vector<16x64xf32>
    %87 = arith.mulf %80, %86 : vector<16x64xf32>
    %88 = arith.addf %68, %87 : vector<16x64xf32>
    %89 = vector.extract_strided_slice %6 {offsets = [64, 0], sizes = [16, 256], strides = [1, 1]} : vector<128x256xf32> to vector<16x256xf32>
    %cst_17 = arith.constant dense<0.000000e+00> : vector<16x256xf32>
    %90 = tpu.matmul %87, %7, %cst_17 {dimension_numbers = #tpu.dot_dimension_numbers<[1], [0], [0], [1], [0, 0, 1, 1], [], []>} : vector<16x64xf32>, vector<64x256xf32>, vector<16x256xf32> -> vector<16x256xf32>
    %91 = arith.addf %89, %90 : vector<16x256xf32>
    %92 = vector.extract_strided_slice %91 {offsets = [0, 0], sizes = [16, 192], strides = [1, 1]} : vector<16x256xf32> to vector<16x192xf32>
    %93 = arith.negf %92 : vector<16x192xf32>
    %94 = math.exp %93 : vector<16x192xf32>
    %cst_18 = arith.constant 1.000000e+00 : f32
    %95 = vector.broadcast %cst_18 : f32 to vector<16x192xf32>
    %96 = arith.addf %95, %94 : vector<16x192xf32>
    %97 = arith.divf %95, %96 : vector<16x192xf32>
    %98 = vector.extract_strided_slice %97 {offsets = [0, 0], sizes = [16, 64], strides = [1, 1]} : vector<16x192xf32> to vector<16x64xf32>
    %99 = vector.extract_strided_slice %97 {offsets = [0, 64], sizes = [16, 64], strides = [1, 1]} : vector<16x192xf32> to vector<16x64xf32>
    %100 = vector.extract_strided_slice %97 {offsets = [0, 128], sizes = [16, 64], strides = [1, 1]} : vector<16x192xf32> to vector<16x64xf32>
    %101 = vector.extract_strided_slice %91 {offsets = [0, 192], sizes = [16, 64], strides = [1, 1]} : vector<16x256xf32> to vector<16x64xf32>
    %102 = math.tanh %101 : vector<16x64xf32>
    %103 = arith.mulf %99, %85 : vector<16x64xf32>
    %104 = arith.mulf %98, %102 : vector<16x64xf32>
    %105 = arith.addf %103, %104 : vector<16x64xf32>
    %106 = math.tanh %105 : vector<16x64xf32>
    %107 = arith.mulf %100, %106 : vector<16x64xf32>
    %108 = arith.addf %88, %107 : vector<16x64xf32>
    %109 = vector.extract_strided_slice %6 {offsets = [80, 0], sizes = [16, 256], strides = [1, 1]} : vector<128x256xf32> to vector<16x256xf32>
    %cst_19 = arith.constant dense<0.000000e+00> : vector<16x256xf32>
    %110 = tpu.matmul %107, %7, %cst_19 {dimension_numbers = #tpu.dot_dimension_numbers<[1], [0], [0], [1], [0, 0, 1, 1], [], []>} : vector<16x64xf32>, vector<64x256xf32>, vector<16x256xf32> -> vector<16x256xf32>
    %111 = arith.addf %109, %110 : vector<16x256xf32>
    %112 = vector.extract_strided_slice %111 {offsets = [0, 0], sizes = [16, 192], strides = [1, 1]} : vector<16x256xf32> to vector<16x192xf32>
    %113 = arith.negf %112 : vector<16x192xf32>
    %114 = math.exp %113 : vector<16x192xf32>
    %cst_20 = arith.constant 1.000000e+00 : f32
    %115 = vector.broadcast %cst_20 : f32 to vector<16x192xf32>
    %116 = arith.addf %115, %114 : vector<16x192xf32>
    %117 = arith.divf %115, %116 : vector<16x192xf32>
    %118 = vector.extract_strided_slice %117 {offsets = [0, 0], sizes = [16, 64], strides = [1, 1]} : vector<16x192xf32> to vector<16x64xf32>
    %119 = vector.extract_strided_slice %117 {offsets = [0, 64], sizes = [16, 64], strides = [1, 1]} : vector<16x192xf32> to vector<16x64xf32>
    %120 = vector.extract_strided_slice %117 {offsets = [0, 128], sizes = [16, 64], strides = [1, 1]} : vector<16x192xf32> to vector<16x64xf32>
    %121 = vector.extract_strided_slice %111 {offsets = [0, 192], sizes = [16, 64], strides = [1, 1]} : vector<16x256xf32> to vector<16x64xf32>
    %122 = math.tanh %121 : vector<16x64xf32>
    %123 = arith.mulf %119, %105 : vector<16x64xf32>
    %124 = arith.mulf %118, %122 : vector<16x64xf32>
    %125 = arith.addf %123, %124 : vector<16x64xf32>
    %126 = math.tanh %125 : vector<16x64xf32>
    %127 = arith.mulf %120, %126 : vector<16x64xf32>
    %128 = arith.addf %108, %127 : vector<16x64xf32>
    %129 = vector.extract_strided_slice %6 {offsets = [96, 0], sizes = [16, 256], strides = [1, 1]} : vector<128x256xf32> to vector<16x256xf32>
    %cst_21 = arith.constant dense<0.000000e+00> : vector<16x256xf32>
    %130 = tpu.matmul %127, %7, %cst_21 {dimension_numbers = #tpu.dot_dimension_numbers<[1], [0], [0], [1], [0, 0, 1, 1], [], []>} : vector<16x64xf32>, vector<64x256xf32>, vector<16x256xf32> -> vector<16x256xf32>
    %131 = arith.addf %129, %130 : vector<16x256xf32>
    %132 = vector.extract_strided_slice %131 {offsets = [0, 0], sizes = [16, 192], strides = [1, 1]} : vector<16x256xf32> to vector<16x192xf32>
    %133 = arith.negf %132 : vector<16x192xf32>
    %134 = math.exp %133 : vector<16x192xf32>
    %cst_22 = arith.constant 1.000000e+00 : f32
    %135 = vector.broadcast %cst_22 : f32 to vector<16x192xf32>
    %136 = arith.addf %135, %134 : vector<16x192xf32>
    %137 = arith.divf %135, %136 : vector<16x192xf32>
    %138 = vector.extract_strided_slice %137 {offsets = [0, 0], sizes = [16, 64], strides = [1, 1]} : vector<16x192xf32> to vector<16x64xf32>
    %139 = vector.extract_strided_slice %137 {offsets = [0, 64], sizes = [16, 64], strides = [1, 1]} : vector<16x192xf32> to vector<16x64xf32>
    %140 = vector.extract_strided_slice %137 {offsets = [0, 128], sizes = [16, 64], strides = [1, 1]} : vector<16x192xf32> to vector<16x64xf32>
    %141 = vector.extract_strided_slice %131 {offsets = [0, 192], sizes = [16, 64], strides = [1, 1]} : vector<16x256xf32> to vector<16x64xf32>
    %142 = math.tanh %141 : vector<16x64xf32>
    %143 = arith.mulf %139, %125 : vector<16x64xf32>
    %144 = arith.mulf %138, %142 : vector<16x64xf32>
    %145 = arith.addf %143, %144 : vector<16x64xf32>
    %146 = math.tanh %145 : vector<16x64xf32>
    %147 = arith.mulf %140, %146 : vector<16x64xf32>
    %148 = arith.addf %128, %147 : vector<16x64xf32>
    %149 = vector.extract_strided_slice %6 {offsets = [112, 0], sizes = [16, 256], strides = [1, 1]} : vector<128x256xf32> to vector<16x256xf32>
    %cst_23 = arith.constant dense<0.000000e+00> : vector<16x256xf32>
    %150 = tpu.matmul %147, %7, %cst_23 {dimension_numbers = #tpu.dot_dimension_numbers<[1], [0], [0], [1], [0, 0, 1, 1], [], []>} : vector<16x64xf32>, vector<64x256xf32>, vector<16x256xf32> -> vector<16x256xf32>
    %151 = arith.addf %149, %150 : vector<16x256xf32>
    %152 = vector.extract_strided_slice %151 {offsets = [0, 0], sizes = [16, 192], strides = [1, 1]} : vector<16x256xf32> to vector<16x192xf32>
    %153 = arith.negf %152 : vector<16x192xf32>
    %154 = math.exp %153 : vector<16x192xf32>
    %cst_24 = arith.constant 1.000000e+00 : f32
    %155 = vector.broadcast %cst_24 : f32 to vector<16x192xf32>
    %156 = arith.addf %155, %154 : vector<16x192xf32>
    %157 = arith.divf %155, %156 : vector<16x192xf32>
    %158 = vector.extract_strided_slice %157 {offsets = [0, 0], sizes = [16, 64], strides = [1, 1]} : vector<16x192xf32> to vector<16x64xf32>
    %159 = vector.extract_strided_slice %157 {offsets = [0, 64], sizes = [16, 64], strides = [1, 1]} : vector<16x192xf32> to vector<16x64xf32>
    %160 = vector.extract_strided_slice %157 {offsets = [0, 128], sizes = [16, 64], strides = [1, 1]} : vector<16x192xf32> to vector<16x64xf32>
    %161 = vector.extract_strided_slice %151 {offsets = [0, 192], sizes = [16, 64], strides = [1, 1]} : vector<16x256xf32> to vector<16x64xf32>
    %162 = math.tanh %161 : vector<16x64xf32>
    %163 = arith.mulf %159, %145 : vector<16x64xf32>
    %164 = arith.mulf %158, %162 : vector<16x64xf32>
    %165 = arith.addf %163, %164 : vector<16x64xf32>
    %166 = math.tanh %165 : vector<16x64xf32>
    %167 = arith.mulf %160, %166 : vector<16x64xf32>
    %168 = arith.addf %148, %167 : vector<16x64xf32>
    %cst_25 = arith.constant 1.250000e-01 : f32
    %169 = vector.broadcast %cst_25 : f32 to vector<16x64xf32>
    %170 = arith.mulf %168, %169 : vector<16x64xf32>
    %c0_26 = arith.constant 0 : index
    %c0_27 = arith.constant 0 : index
    %171 = vector.load %arg5[%c0_26, %c0_27] : memref<64x3xf32, #tpu.memory_space<vmem>>, vector<64x3xf32>
    %cst_28 = arith.constant dense<0.000000e+00> : vector<16x3xf32>
    %172 = tpu.matmul %170, %171, %cst_28 {dimension_numbers = #tpu.dot_dimension_numbers<[1], [0], [0], [1], [0, 0, 1, 1], [], []>} : vector<16x64xf32>, vector<64x3xf32>, vector<16x3xf32> -> vector<16x3xf32>
    %c0_29 = arith.constant 0 : index
    %c0_30 = arith.constant 0 : index
    %173 = vector.load %arg6[%c0_29, %c0_30] : memref<1x3xf32, #tpu.memory_space<vmem>>, vector<1x3xf32>
    %174 = vector.broadcast %173 : vector<1x3xf32> to vector<16x3xf32>
    %175 = arith.addf %172, %174 : vector<16x3xf32>
    %c0_31 = arith.constant 0 : index
    %c0_32 = arith.constant 0 : index
    %176 = vector.load %arg7[%c0_31, %c0_32] : memref<16x3xf32, #tpu.memory_space<vmem>>, vector<16x3xf32>
    tpu.vector_store %arg7[%c0_31, %c0_32], %175 {strides = array<i32>} : memref<16x3xf32, #tpu.memory_space<vmem>>, vector<16x3xf32>,
    return
  }
  func.func @transform_0(%arg0: i32) -> (i32, i32, i32) {
    %c0_i32 = arith.constant 0 : i32
    %c0_i32_0 = arith.constant 0 : i32
    %c0_i32_1 = arith.constant 0 : i32
    return %c0_i32, %arg0, %c0_i32_0 : i32, i32, i32
  }
  func.func @transform_1(%arg0: i32) -> (i32, i32) {
    %c0_i32 = arith.constant 0 : i32
    %c0_i32_0 = arith.constant 0 : i32
    %c0_i32_1 = arith.constant 0 : i32
    return %c0_i32, %c0_i32_0 : i32, i32
  }
  func.func @transform_2(%arg0: i32) -> (i32, i32) {
    %c0_i32 = arith.constant 0 : i32
    %c0_i32_0 = arith.constant 0 : i32
    %c0_i32_1 = arith.constant 0 : i32
    return %c0_i32, %c0_i32_0 : i32, i32
  }
  func.func @transform_3(%arg0: i32) -> (i32, i32) {
    %c0_i32 = arith.constant 0 : i32
    %c0_i32_0 = arith.constant 0 : i32
    %c0_i32_1 = arith.constant 0 : i32
    return %c0_i32, %c0_i32_0 : i32, i32
  }
  func.func @transform_4(%arg0: i32) -> (i32, i32) {
    %c0_i32 = arith.constant 0 : i32
    %c0_i32_0 = arith.constant 0 : i32
    %c0_i32_1 = arith.constant 0 : i32
    return %c0_i32, %c0_i32_0 : i32, i32
  }
  func.func @transform_5(%arg0: i32) -> (i32, i32) {
    %c0_i32 = arith.constant 0 : i32
    %c0_i32_0 = arith.constant 0 : i32
    %c0_i32_1 = arith.constant 0 : i32
    return %c0_i32, %c0_i32_0 : i32, i32
  }
  func.func @transform_6(%arg0: i32) -> (i32, i32) {
    %c0_i32 = arith.constant 0 : i32
    %c0_i32_0 = arith.constant 0 : i32
    return %arg0, %c0_i32 : i32, i32
  }
}

</mosaic_0001>

<llo_original>
// kernel: tpu_custom_call.1
$region0: #{tpu_custom_call.1}
  #allocation0 [shape = 'u32[]', space=smem, size = 0x4, offset = 0x4, fixed_abs, tag = 'smem constant byte address 0x4 - core index']
  #allocation1 [shape = 'u32[72,128]{1,0:T(1,128)}', space=vmem, size = 0x9000, scoped, tag = 'internal scratch']
  %s0 = inlined_call_operand.hbm [shape: f32[8,16,248], index: 0, kind: input, shape index: {}]
  %s1 = inlined_call_operand.hbm [shape: f32[248,256], index: 1, kind: input, shape index: {}]
  %s2 = inlined_call_operand.hbm [shape: f32[64,256], index: 2, kind: input, shape index: {}]
  %s3 = inlined_call_operand.vmem [shape: f32[1,256], index: 3, kind: input, shape index: {}]
  %s4 = inlined_call_operand.vmem [shape: f32[64,3], index: 4, kind: input, shape index: {}]
  %s5 = inlined_call_operand.vmem [shape: f32[1,3], index: 5, kind: input, shape index: {}]
  %s6 = inlined_call_operand.vmem [shape: f32[16,3], index: 6, kind: output, shape index: {}]
  %s7 = sld [smem:[#allocation0]]
  $region46: #{tpu_custom_call.1} parent=0
    _
  %s9 = ssub.s32 1, %s7
  %s10 = scalar_select 0, %s9, %s7
  $region1: #{tpu_custom_call.1} parent=0
    #allocation2 [shape = 'u8[131072]{0}', space=vmem, size = 0x20000, scoped, tag = 'input window, operand 0, single buffered']
    #allocation3 [shape = 's32[1]{0}', space=sflag, size = 0x4, scoped, tag = 'scoped memory for tpu_custom_call.1']
    #allocation4 [shape = 'u8[253952]{0}', space=vmem, size = 0x3e000, scoped, tag = 'input window, operand 1, single buffered']
    #allocation5 [shape = 's32[1]{0}', space=sflag, size = 0x4, scoped, tag = 'scoped memory for tpu_custom_call.1']
    #allocation6 [shape = 'u8[65536]{0}', space=vmem, size = 0x10000, scoped, tag = 'input window, operand 2, single buffered']
    %11 = vsyncpa [#allocation3], 0
    %12 = vsyncpa [#allocation5], 0
    // Predicated region
    $region2: #{tpu_custom_call.1} parent=1 // pred_check
      _
    $region3: #{tpu_custom_call.1} parent=1 // pred_check_branch
      %14 = sbr.rel (0) target = $region5
    $region4: #{tpu_custom_call.1} parent=1 // pred_region
      %16 = vsyncadd [#allocation3], 0
      %s17 = sshll.u32 %s0, 4
      %s18 = int_to_ptr.hbm [resolvable:$true] %s17
      %s19 = sshll.u32 [#allocation2], 4
      %s20 = int_to_ptr.vmem [resolvable:$true] %s19
      %25 = dma.hbm_to_vmem [thread:$0]  %s18, 4096, %s20, [#allocation3], 256, 256, 16
    $region5: #{tpu_custom_call.1} parent=1 // pred_fallthru
      _
    // Predicated region
    $region6: #{tpu_custom_call.1} parent=1 // pred_check
      _
    $region7: #{tpu_custom_call.1} parent=1 // pred_check_branch
      %27 = sbr.rel (0) target = $region9
    $region8: #{tpu_custom_call.1} parent=1 // pred_region
      %29 = vsyncadd [#allocation5], 0
      %s30 = sshll.u32 %s1, 4
      %s31 = int_to_ptr.hbm [resolvable:$true] %s30
      %s32 = sshll.u32 [#allocation4], 4
      %s33 = int_to_ptr.vmem [resolvable:$true] %s32
      %38 = dma.hbm_to_vmem [thread:$0]  %s31, 7936, %s33, [#allocation5], 256, 256, 16
    $region9: #{tpu_custom_call.1} parent=1 // pred_fallthru
      _
    // Predicated region
    $region10: #{tpu_custom_call.1} parent=1 // pred_check
      _
    $region11: #{tpu_custom_call.1} parent=1 // pred_check_branch
      %40 = sbr.rel (0) target = $region13
    $region12: #{tpu_custom_call.1} parent=1 // pred_region
      %42 = vsyncadd [#allocation5], 0
      %s43 = sshll.u32 %s2, 4
      %s44 = int_to_ptr.hbm [resolvable:$true] %s43
      %s45 = sshll.u32 [#allocation6], 4
      %s46 = int_to_ptr.vmem [resolvable:$true] %s45
      %51 = dma.hbm_to_vmem [thread:$0]  %s44, 2048, %s46, [#allocation5], 256, 256, 16
    $region13: #{tpu_custom_call.1} parent=1 // pred_fallthru
      _
    // Predicated region
    $region14: #{tpu_custom_call.1} parent=1 // pred_check
      _
    $region15: #{tpu_custom_call.1} parent=1 // pred_check_branch
      %53 = sbr.rel (0) target = $region17
    $region16: #{tpu_custom_call.1} parent=1 // pred_region
      _
    $region17: #{tpu_custom_call.1} parent=1 // pred_fallthru
      _
    // Predicated region
    $region18: #{tpu_custom_call.1} parent=1 // pred_check
      _
    $region19: #{tpu_custom_call.1} parent=1 // pred_check_branch
      %55 = sbr.rel (0) target = $region21
    $region20: #{tpu_custom_call.1} parent=1 // pred_region
      _
    $region21: #{tpu_custom_call.1} parent=1 // pred_fallthru
      _
    // Predicated region
    $region22: #{tpu_custom_call.1} parent=1 // pred_check
      _
    $region23: #{tpu_custom_call.1} parent=1 // pred_check_branch
      %57 = sbr.rel (0) target = $region25
    $region24: #{tpu_custom_call.1} parent=1 // pred_region
      _
    $region25: #{tpu_custom_call.1} parent=1 // pred_fallthru
      _
    // Predicated region
    $region26: #{tpu_custom_call.1} parent=1 // pred_check
      _
    $region27: #{tpu_custom_call.1} parent=1 // pred_check_branch
      %59 = sbr.rel (0) target = $region29
    $region28: #{tpu_custom_call.1} parent=1 // pred_region
      %61 = dma.done [#allocation3], 4096
    $region29: #{tpu_custom_call.1} parent=1 // pred_fallthru
      _
    // Predicated region
    $region30: #{tpu_custom_call.1} parent=1 // pred_check
      _
    $region31: #{tpu_custom_call.1} parent=1 // pred_check_branch
      %63 = sbr.rel (0) target = $region33
    $region32: #{tpu_custom_call.1} parent=1 // pred_region
      %65 = dma.done [#allocation5], 7936
    $region33: #{tpu_custom_call.1} parent=1 // pred_fallthru
      _
    // Predicated region
    $region34: #{tpu_custom_call.1} parent=1 // pred_check
      _
    $region35: #{tpu_custom_call.1} parent=1 // pred_check_branch
      %67 = sbr.rel (0) target = $region37
    $region36: #{tpu_custom_call.1} parent=1 // pred_region
      %69 = dma.done [#allocation5], 2048
    $region37: #{tpu_custom_call.1} parent=1 // pred_fallthru
      _
    %v70 = vld [vmem:[#allocation2] sm:$0xff]
    %v71 = vld [vmem:[#allocation2 + $0x8] sm:$0xff]
    %v72 = vld [vmem:[#allocation2 + $0x10] sm:$0xff]
    %v73 = vld [vmem:[#allocation2 + $0x18] sm:$0xff]
    %v74 = vld [vmem:[#allocation2 + $0x20] sm:$0xff]
    %v75 = vld [vmem:[#allocation2 + $0x28] sm:$0xff]
    %v76 = vld [vmem:[#allocation2 + $0x30] sm:$0xff]
    %v77 = vld [vmem:[#allocation2 + $0x38] sm:$0xff]
    %v78 = vld [vmem:[#allocation2 + $0x40] sm:$0xff]
    %v79 = vld [vmem:[#allocation2 + $0x48] sm:$0xff]
    %v80 = vld [vmem:[#allocation2 + $0x50] sm:$0xff]
    %v81 = vld [vmem:[#allocation2 + $0x58] sm:$0xff]
    %v82 = vld [vmem:[#allocation2 + $0x60] sm:$0xff]
    %v83 = vld [vmem:[#allocation2 + $0x68] sm:$0xff]
    %v84 = vld [vmem:[#allocation2 + $0x70] sm:$0xff]
    %v85 = vld [vmem:[#allocation2 + $0x78] sm:$0xff]
    %v86 = vld [vmem:[#allocation2 + $0x80] sm:$0xff]
    %v87 = vld [vmem:[#allocation2 + $0x88] sm:$0xff]
    %v88 = vld [vmem:[#allocation2 + $0x90] sm:$0xff]
    %v89 = vld [vmem:[#allocation2 + $0x98] sm:$0xff]
    %v90 = vld [vmem:[#allocation2 + $0xa0] sm:$0xff]
    %v91 = vld [vmem:[#allocation2 + $0xa8] sm:$0xff]
    %v92 = vld [vmem:[#allocation2 + $0xb0] sm:$0xff]
    %v93 = vld [vmem:[#allocation2 + $0xb8] sm:$0xff]
    %v94 = vld [vmem:[#allocation2 + $0xc0] sm:$0xff]
    %v95 = vld [vmem:[#allocation2 + $0xc8] sm:$0xff]
    %v96 = vld [vmem:[#allocation2 + $0xd0] sm:$0xff]
    %v97 = vld [vmem:[#allocation2 + $0xd8] sm:$0xff]
    %v98 = vld [vmem:[#allocation2 + $0xe0] sm:$0xff]
    %v99 = vld [vmem:[#allocation2 + $0xe8] sm:$0xff]
    %v100 = vld [vmem:[#allocation2 + $0xf0] sm:$0xff]
    %v101 = vld [vmem:[#allocation2 + $0xf8] sm:$0xff]
    %v102 = vld [vmem:[#allocation4] sm:$0xff]
    %v103 = vld [vmem:[#allocation4 + $0x8] sm:$0xff]
    %v104 = vld [vmem:[#allocation4 + $0x10] sm:$0xff]
    %v105 = vld [vmem:[#allocation4 + $0x18] sm:$0xff]
    %v106 = vld [vmem:[#allocation4 + $0x20] sm:$0xff]
    %v107 = vld [vmem:[#allocation4 + $0x28] sm:$0xff]
    %v108 = vld [vmem:[#allocation4 + $0x30] sm:$0xff]
    %v109 = vld [vmem:[#allocation4 + $0x38] sm:$0xff]
    %v110 = vld [vmem:[#allocation4 + $0x40] sm:$0xff]
    %v111 = vld [vmem:[#allocation4 + $0x48] sm:$0xff]
    %v112 = vld [vmem:[#allocation4 + $0x50] sm:$0xff]
    %v113 = vld [vmem:[#allocation4 + $0x58] sm:$0xff]
    %v114 = vld [vmem:[#allocation4 + $0x60] sm:$0xff]
    %v115 = vld [vmem:[#allocation4 + $0x68] sm:$0xff]
    %v116 = vld [vmem:[#allocation4 + $0x70] sm:$0xff]
    %v117 = vld [vmem:[#allocation4 + $0x78] sm:$0xff]
    %v118 = vld [vmem:[#allocation4 + $0x80] sm:$0xff]
    %v119 = vld [vmem:[#allocation4 + $0x88] sm:$0xff]
    %v120 = vld [vmem:[#allocation4 + $0x90] sm:$0xff]
    %v121 = vld [vmem:[#allocation4 + $0x98] sm:$0xff]
    %v122 = vld [vmem:[#allocation4 + $0xa0] sm:$0xff]
    %v123 = vld [vmem:[#allocation4 + $0xa8] sm:$0xff]
    %v124 = vld [vmem:[#allocation4 + $0xb0] sm:$0xff]
    %v125 = vld [vmem:[#allocation4 + $0xb8] sm:$0xff]
    %v126 = vld [vmem:[#allocation4 + $0xc0] sm:$0xff]
    %v127 = vld [vmem:[#allocation4 + $0xc8] sm:$0xff]
    %v128 = vld [vmem:[#allocation4 + $0xd0] sm:$0xff]
    %v129 = vld [vmem:[#allocation4 + $0xd8] sm:$0xff]
    %v130 = vld [vmem:[#allocation4 + $0xe0] sm:$0xff]
    %v131 = vld [vmem:[#allocation4 + $0xe8] sm:$0xff]
    %v132 = vld [vmem:[#allocation4 + $0xf0] sm:$0xff]
    %v133 = vld [vmem:[#allocation4 + $0xf8] sm:$0xff]
    %v134 = vld [vmem:[#allocation4 + $0x100] sm:$0xff]
    %v135 = vld [vmem:[#allocation4 + $0x108] sm:$0xff]
    %v136 = vld [vmem:[#allocation4 + $0x110] sm:$0xff]
    %v137 = vld [vmem:[#allocation4 + $0x118] sm:$0xff]
    %v138 = vld [vmem:[#allocation4 + $0x120] sm:$0xff]
    %v139 = vld [vmem:[#allocation4 + $0x128] sm:$0xff]
    %v140 = vld [vmem:[#allocation4 + $0x130] sm:$0xff]
    %v141 = vld [vmem:[#allocation4 + $0x138] sm:$0xff]
    %v142 = vld [vmem:[#allocation4 + $0x140] sm:$0xff]
    %v143 = vld [vmem:[#allocation4 + $0x148] sm:$0xff]
    %v144 = vld [vmem:[#allocation4 + $0x150] sm:$0xff]
    %v145 = vld [vmem:[#allocation4 + $0x158] sm:$0xff]
    %v146 = vld [vmem:[#allocation4 + $0x160] sm:$0xff]
    %v147 = vld [vmem:[#allocation4 + $0x168] sm:$0xff]
    %v148 = vld [vmem:[#allocation4 + $0x170] sm:$0xff]
    %v149 = vld [vmem:[#allocation4 + $0x178] sm:$0xff]
    %v150 = vld [vmem:[#allocation4 + $0x180] sm:$0xff]
    %v151 = vld [vmem:[#allocation4 + $0x188] sm:$0xff]
    %v152 = vld [vmem:[#allocation4 + $0x190] sm:$0xff]
    %v153 = vld [vmem:[#allocation4 + $0x198] sm:$0xff]
    %v154 = vld [vmem:[#allocation4 + $0x1a0] sm:$0xff]
    %v155 = vld [vmem:[#allocation4 + $0x1a8] sm:$0xff]
    %v156 = vld [vmem:[#allocation4 + $0x1b0] sm:$0xff]
    %v157 = vld [vmem:[#allocation4 + $0x1b8] sm:$0xff]
    %v158 = vld [vmem:[#allocation4 + $0x1c0] sm:$0xff]
    %v159 = vld [vmem:[#allocation4 + $0x1c8] sm:$0xff]
    %v160 = vld [vmem:[#allocation4 + $0x1d0] sm:$0xff]
    %v161 = vld [vmem:[#allocation4 + $0x1d8] sm:$0xff]
    %v162 = vld [vmem:[#allocation4 + $0x1e0] sm:$0xff]
    %v163 = vld [vmem:[#allocation4 + $0x1e8] sm:$0xff]
    %v164 = vld [vmem:[%s3] sm:$0x3]
    %v166 = vperm.slane %v164, 0
    %v167 = vperm.slane %v164, 1
    %vm170 = vcmask 982016
    %v172 = vsel %vm170, %v71, 0
    %v175 = vsel %vm170, %v73, 0
    %v178 = vsel %vm170, %v75, 0
    %v181 = vsel %vm170, %v77, 0
    %v184 = vsel %vm170, %v79, 0
    %v187 = vsel %vm170, %v81, 0
    %v190 = vsel %vm170, %v83, 0
    %v193 = vsel %vm170, %v85, 0
    %v196 = vsel %vm170, %v87, 0
    %v199 = vsel %vm170, %v89, 0
    %v202 = vsel %vm170, %v91, 0
    %v205 = vsel %vm170, %v93, 0
    %v208 = vsel %vm170, %v95, 0
    %v211 = vsel %vm170, %v97, 0
    %v214 = vsel %vm170, %v99, 0
    %v217 = vsel %vm170, %v101, 0
    %219 = vmatpush.msra.mxu0 %v132
    %220 = vmatpush.msra.mxu0 %v130
    %221 = vmatpush.msra.mxu0 %v128
    %222 = vmatpush.msra.mxu0 %v126
    %223 = vmatpush.msra.mxu0 %v124
    %224 = vmatpush.msra.mxu0 %v122
    %225 = vmatpush.msra.mxu0 %v120
    %226 = vmatpush.msra.mxu0 %v118
    %227 = vmatpush.msra.mxu0 %v116
    %228 = vmatpush.msra.mxu0 %v114
    %229 = vmatpush.msra.mxu0 %v112
    %230 = vmatpush.msra.mxu0 %v110
    %231 = vmatpush.msra.mxu0 %v108
    %232 = vmatpush.msra.mxu0 %v106
    %233 = vmatpush.msra.mxu0 %v104
    %234 = vmatpush.msra.mxu0 %v102
    %235 = vmatmul.f32.gmra.mxu0 %v70
    %v236 = vpop.f32.mrf.mxu0
    %v237 = vadd.f32 %v166, %v236
    %238 = vmatmul.f32.gmra.mxu0 %v72
    %v239 = vpop.f32.mrf.mxu0
    %v240 = vadd.f32 %v166, %v239
    %241 = vmatmul.f32.gmra.mxu0 %v74
    %v242 = vpop.f32.mrf.mxu0
    %v243 = vadd.f32 %v166, %v242
    %244 = vmatmul.f32.gmra.mxu0 %v76
    %v245 = vpop.f32.mrf.mxu0
    %v246 = vadd.f32 %v166, %v245
    %247 = vmatmul.f32.gmra.mxu0 %v78
    %v248 = vpop.f32.mrf.mxu0
    %v249 = vadd.f32 %v166, %v248
    %250 = vmatmul.f32.gmra.mxu0 %v80
    %v251 = vpop.f32.mrf.mxu0
    %v252 = vadd.f32 %v166, %v251
    %253 = vmatmul.f32.gmra.mxu0 %v82
    %v254 = vpop.f32.mrf.mxu0
    %v255 = vadd.f32 %v166, %v254
    %256 = vmatmul.f32.gmra.mxu0 %v84
    %v257 = vpop.f32.mrf.mxu0
    %v258 = vadd.f32 %v166, %v257
    %259 = vmatmul.f32.gmra.mxu0 %v86
    %v260 = vpop.f32.mrf.mxu0
    %v261 = vadd.f32 %v166, %v260
    %262 = vmatmul.f32.gmra.mxu0 %v88
    %v263 = vpop.f32.mrf.mxu0
    %v264 = vadd.f32 %v166, %v263
    %265 = vmatmul.f32.gmra.mxu0 %v90
    %v266 = vpop.f32.mrf.mxu0
    %v267 = vadd.f32 %v166, %v266
    %268 = vmatmul.f32.gmra.mxu0 %v92
    %v269 = vpop.f32.mrf.mxu0
    %v270 = vadd.f32 %v166, %v269
    %271 = vmatmul.f32.gmra.mxu0 %v94
    %v272 = vpop.f32.mrf.mxu0
    %v273 = vadd.f32 %v166, %v272
    %274 = vmatmul.f32.gmra.mxu0 %v96
    %v275 = vpop.f32.mrf.mxu0
    %v276 = vadd.f32 %v166, %v275
    %277 = vmatmul.f32.gmra.mxu0 %v98
    %v278 = vpop.f32.mrf.mxu0
    %v279 = vadd.f32 %v166, %v278
    %280 = vmatmul.f32.gmra.mxu0 %v100
    %v281 = vpop.f32.mrf.mxu0
    %v282 = vadd.f32 %v166, %v281
    %283 = vdwg.mxu0
    %284 = vmatpush.msra.mxu0 0.0
    %285 = vmatpush.msra.mxu0 %v162
    %286 = vmatpush.msra.mxu0 %v160
    %287 = vmatpush.msra.mxu0 %v158
    %288 = vmatpush.msra.mxu0 %v156
    %289 = vmatpush.msra.mxu0 %v154
    %290 = vmatpush.msra.mxu0 %v152
    %291 = vmatpush.msra.mxu0 %v150
    %292 = vmatpush.msra.mxu0 %v148
    %293 = vmatpush.msra.mxu0 %v146
    %294 = vmatpush.msra.mxu0 %v144
    %295 = vmatpush.msra.mxu0 %v142
    %296 = vmatpush.msra.mxu0 %v140
    %297 = vmatpush.msra.mxu0 %v138
    %298 = vmatpush.msra.mxu0 %v136
    %299 = vmatpush.msra.mxu0 %v134
    %300 = vmatmul.f32.gmra.mxu0 %v172
    %v301 = vpop.f32.mrf.mxu0
    %v302 = vadd.f32 %v237, %v301
    %303 = vmatmul.f32.gmra.mxu0 %v175
    %v304 = vpop.f32.mrf.mxu0
    %v305 = vadd.f32 %v240, %v304
    %306 = vmatmul.f32.gmra.mxu0 %v178
    %v307 = vpop.f32.mrf.mxu0
    %v308 = vadd.f32 %v243, %v307
    %309 = vmatmul.f32.gmra.mxu0 %v181
    %v310 = vpop.f32.mrf.mxu0
    %v311 = vadd.f32 %v246, %v310
    %312 = vmatmul.f32.gmra.mxu0 %v184
    %v313 = vpop.f32.mrf.mxu0
    %v314 = vadd.f32 %v249, %v313
    %315 = vmatmul.f32.gmra.mxu0 %v187
    %v316 = vpop.f32.mrf.mxu0
    %v317 = vadd.f32 %v252, %v316
    %318 = vmatmul.f32.gmra.mxu0 %v190
    %v319 = vpop.f32.mrf.mxu0
    %v320 = vadd.f32 %v255, %v319
    %321 = vmatmul.f32.gmra.mxu0 %v193
    %v322 = vpop.f32.mrf.mxu0
    %v323 = vadd.f32 %v258, %v322
    %324 = vmatmul.f32.gmra.mxu0 %v196
    %v325 = vpop.f32.mrf.mxu0
    %v326 = vadd.f32 %v261, %v325
    %327 = vmatmul.f32.gmra.mxu0 %v199
    %v328 = vpop.f32.mrf.mxu0
    %v329 = vadd.f32 %v264, %v328
    %330 = vmatmul.f32.gmra.mxu0 %v202
    %v331 = vpop.f32.mrf.mxu0
    %v332 = vadd.f32 %v267, %v331
    %333 = vmatmul.f32.gmra.mxu0 %v205
    %v334 = vpop.f32.mrf.mxu0
    %v335 = vadd.f32 %v270, %v334
    %336 = vmatmul.f32.gmra.mxu0 %v208
    %v337 = vpop.f32.mrf.mxu0
    %v338 = vadd.f32 %v273, %v337
    %339 = vmatmul.f32.gmra.mxu0 %v211
    %v340 = vpop.f32.mrf.mxu0
    %v341 = vadd.f32 %v276, %v340
    %342 = vmatmul.f32.gmra.mxu0 %v214
    %v343 = vpop.f32.mrf.mxu0
    %v344 = vadd.f32 %v279, %v343
    %345 = vmatmul.f32.gmra.mxu0 %v217
    %v346 = vpop.f32.mrf.mxu0
    %v347 = vadd.f32 %v282, %v346
    %348 = vdwg.mxu0
    %349 = vmatpush.msra.mxu0 %v133
    %350 = vmatpush.msra.mxu0 %v131
    %351 = vmatpush.msra.mxu0 %v129
    %352 = vmatpush.msra.mxu0 %v127
    %353 = vmatpush.msra.mxu0 %v125
    %354 = vmatpush.msra.mxu0 %v123
    %355 = vmatpush.msra.mxu0 %v121
    %356 = vmatpush.msra.mxu0 %v119
    %357 = vmatpush.msra.mxu0 %v117
    %358 = vmatpush.msra.mxu0 %v115
    %359 = vmatpush.msra.mxu0 %v113
    %360 = vmatpush.msra.mxu0 %v111
    %361 = vmatpush.msra.mxu0 %v109
    %362 = vmatpush.msra.mxu0 %v107
    %363 = vmatpush.msra.mxu0 %v105
    %364 = vmatpush.msra.mxu0 %v103
    %365 = vmatmul.f32.gmra.mxu0 %v70
    %v366 = vpop.f32.mrf.mxu0
    %v367 = vadd.f32 %v167, %v366
    %368 = vmatmul.f32.gmra.mxu0 %v72
    %v369 = vpop.f32.mrf.mxu0
    %v370 = vadd.f32 %v167, %v369
    %371 = vmatmul.f32.gmra.mxu0 %v74
    %v372 = vpop.f32.mrf.mxu0
    %v373 = vadd.f32 %v167, %v372
    %374 = vmatmul.f32.gmra.mxu0 %v76
    %v375 = vpop.f32.mrf.mxu0
    %v376 = vadd.f32 %v167, %v375
    %377 = vmatmul.f32.gmra.mxu0 %v78
    %v378 = vpop.f32.mrf.mxu0
    %v379 = vadd.f32 %v167, %v378
    %380 = vmatmul.f32.gmra.mxu0 %v80
    %v381 = vpop.f32.mrf.mxu0
    %v382 = vadd.f32 %v167, %v381
    %383 = vmatmul.f32.gmra.mxu0 %v82
    %v384 = vpop.f32.mrf.mxu0
    %v385 = vadd.f32 %v167, %v384
    %386 = vmatmul.f32.gmra.mxu0 %v84
    %v387 = vpop.f32.mrf.mxu0
    %v388 = vadd.f32 %v167, %v387
    %389 = vmatmul.f32.gmra.mxu0 %v86
    %v390 = vpop.f32.mrf.mxu0
    %v391 = vadd.f32 %v167, %v390
    %392 = vmatmul.f32.gmra.mxu0 %v88
    %v393 = vpop.f32.mrf.mxu0
    %v394 = vadd.f32 %v167, %v393
    %395 = vmatmul.f32.gmra.mxu0 %v90
    %v396 = vpop.f32.mrf.mxu0
    %v397 = vadd.f32 %v167, %v396
    %398 = vmatmul.f32.gmra.mxu0 %v92
    %v399 = vpop.f32.mrf.mxu0
    %v400 = vadd.f32 %v167, %v399
    %401 = vmatmul.f32.gmra.mxu0 %v94
    %v402 = vpop.f32.mrf.mxu0
    %v403 = vadd.f32 %v167, %v402
    %404 = vmatmul.f32.gmra.mxu0 %v96
    %v405 = vpop.f32.mrf.mxu0
    %v406 = vadd.f32 %v167, %v405
    %407 = vmatmul.f32.gmra.mxu0 %v98
    %v408 = vpop.f32.mrf.mxu0
    %v409 = vadd.f32 %v167, %v408
    %410 = vmatmul.f32.gmra.mxu0 %v100
    %v411 = vpop.f32.mrf.mxu0
    %v412 = vadd.f32 %v167, %v411
    %413 = vdwg.mxu0
    %414 = vmatpush.msra.mxu0 0.0
    %415 = vmatpush.msra.mxu0 %v163
    %416 = vmatpush.msra.mxu0 %v161
    %417 = vmatpush.msra.mxu0 %v159
    %418 = vmatpush.msra.mxu0 %v157
    %419 = vmatpush.msra.mxu0 %v155
    %420 = vmatpush.msra.mxu0 %v153
    %421 = vmatpush.msra.mxu0 %v151
    %422 = vmatpush.msra.mxu0 %v149
    %423 = vmatpush.msra.mxu0 %v147
    %424 = vmatpush.msra.mxu0 %v145
    %425 = vmatpush.msra.mxu0 %v143
    %426 = vmatpush.msra.mxu0 %v141
    %427 = vmatpush.msra.mxu0 %v139
    %428 = vmatpush.msra.mxu0 %v137
    %429 = vmatpush.msra.mxu0 %v135
    %430 = vmatmul.f32.gmra.mxu0 %v172
    %v431 = vpop.f32.mrf.mxu0
    %v432 = vadd.f32 %v367, %v431
    %433 = vmatmul.f32.gmra.mxu0 %v175
    %v434 = vpop.f32.mrf.mxu0
    %v435 = vadd.f32 %v370, %v434
    %436 = vmatmul.f32.gmra.mxu0 %v178
    %v437 = vpop.f32.mrf.mxu0
    %v438 = vadd.f32 %v373, %v437
    %439 = vmatmul.f32.gmra.mxu0 %v181
    %v440 = vpop.f32.mrf.mxu0
    %v441 = vadd.f32 %v376, %v440
    %442 = vmatmul.f32.gmra.mxu0 %v184
    %v443 = vpop.f32.mrf.mxu0
    %v444 = vadd.f32 %v379, %v443
    %445 = vmatmul.f32.gmra.mxu0 %v187
    %v446 = vpop.f32.mrf.mxu0
    %v447 = vadd.f32 %v382, %v446
    %448 = vmatmul.f32.gmra.mxu0 %v190
    %v449 = vpop.f32.mrf.mxu0
    %v450 = vadd.f32 %v385, %v449
    %451 = vmatmul.f32.gmra.mxu0 %v193
    %v452 = vpop.f32.mrf.mxu0
    %v453 = vadd.f32 %v388, %v452
    %454 = vmatmul.f32.gmra.mxu0 %v196
    %v455 = vpop.f32.mrf.mxu0
    %v456 = vadd.f32 %v391, %v455
    %457 = vmatmul.f32.gmra.mxu0 %v199
    %v458 = vpop.f32.mrf.mxu0
    %v459 = vadd.f32 %v394, %v458
    %460 = vmatmul.f32.gmra.mxu0 %v202
    %v461 = vpop.f32.mrf.mxu0
    %v462 = vadd.f32 %v397, %v461
    %463 = vmatmul.f32.gmra.mxu0 %v205
    %v464 = vpop.f32.mrf.mxu0
    %v465 = vadd.f32 %v400, %v464
    %466 = vmatmul.f32.gmra.mxu0 %v208
    %v467 = vpop.f32.mrf.mxu0
    %v468 = vadd.f32 %v403, %v467
    %469 = vmatmul.f32.gmra.mxu0 %v211
    %v470 = vpop.f32.mrf.mxu0
    %v471 = vadd.f32 %v406, %v470
    %472 = vmatmul.f32.gmra.mxu0 %v214
    %v473 = vpop.f32.mrf.mxu0
    %v474 = vadd.f32 %v409, %v473
    %475 = vmatmul.f32.gmra.mxu0 %v217
    %v476 = vpop.f32.mrf.mxu0
    %v477 = vadd.f32 %v412, %v476
    %478 = vdwg.mxu0
    %v479 = vld [vmem:[#allocation6] sm:$0xff]
    %v480 = vld [vmem:[#allocation6 + $0x8] sm:$0xff]
    %v481 = vld [vmem:[#allocation6 + $0x10] sm:$0xff]
    %v482 = vld [vmem:[#allocation6 + $0x18] sm:$0xff]
    %v483 = vld [vmem:[#allocation6 + $0x20] sm:$0xff]
    %v484 = vld [vmem:[#allocation6 + $0x28] sm:$0xff]
    %v485 = vld [vmem:[#allocation6 + $0x30] sm:$0xff]
    %v486 = vld [vmem:[#allocation6 + $0x38] sm:$0xff]
    %v487 = vld [vmem:[#allocation6 + $0x40] sm:$0xff]
    %v488 = vld [vmem:[#allocation6 + $0x48] sm:$0xff]
    %v489 = vld [vmem:[#allocation6 + $0x50] sm:$0xff]
    %v490 = vld [vmem:[#allocation6 + $0x58] sm:$0xff]
    %v491 = vld [vmem:[#allocation6 + $0x60] sm:$0xff]
    %v492 = vld [vmem:[#allocation6 + $0x68] sm:$0xff]
    %v493 = vld [vmem:[#allocation6 + $0x70] sm:$0xff]
    %v494 = vld [vmem:[#allocation6 + $0x78] sm:$0xff]
    %vm495 = vcmask 523264
    %v497 = vsel %vm495, 0.0, 0
    %499 = vmatpush.msra.mxu0 0.0
    %500 = vmatpush.msra.mxu0 0.0
    %501 = vmatpush.msra.mxu0 0.0
    %502 = vmatpush.msra.mxu0 0.0
    %503 = vmatpush.msra.mxu0 0.0
    %504 = vmatpush.msra.mxu0 0.0
    %505 = vmatpush.msra.mxu0 0.0
    %506 = vmatpush.msra.mxu0 0.0
    %507 = vmatpush.msra.mxu0 %v493
    %508 = vmatpush.msra.mxu0 %v491
    %509 = vmatpush.msra.mxu0 %v489
    %510 = vmatpush.msra.mxu0 %v487
    %511 = vmatpush.msra.mxu0 %v485
    %512 = vmatpush.msra.mxu0 %v483
    %513 = vmatpush.msra.mxu0 %v481
    %514 = vmatpush.msra.mxu0 %v479
    %515 = vmatmul.f32.gmra.mxu0 %v497
    %v516 = vpop.f32.mrf.mxu0
    %v517 = vadd.f32 0.0, %v516
    %518 = vmatmul.f32.gmra.mxu0 %v497
    %v519 = vpop.f32.mrf.mxu0
    %v520 = vadd.f32 0.0, %v519
    %521 = vdwg.mxu0
    %522 = vmatpush.msra.mxu0 0.0
    %523 = vmatpush.msra.mxu0 0.0
    %524 = vmatpush.msra.mxu0 0.0
    %525 = vmatpush.msra.mxu0 0.0
    %526 = vmatpush.msra.mxu0 0.0
    %527 = vmatpush.msra.mxu0 0.0
    %528 = vmatpush.msra.mxu0 0.0
    %529 = vmatpush.msra.mxu0 0.0
    %530 = vmatpush.msra.mxu0 %v494
    %531 = vmatpush.msra.mxu0 %v492
    %532 = vmatpush.msra.mxu0 %v490
    %533 = vmatpush.msra.mxu0 %v488
    %534 = vmatpush.msra.mxu0 %v486
    %535 = vmatpush.msra.mxu0 %v484
    %536 = vmatpush.msra.mxu0 %v482
    %537 = vmatpush.msra.mxu0 %v480
    %538 = vmatmul.f32.gmra.mxu0 %v497
    %v539 = vpop.f32.mrf.mxu0
    %v540 = vadd.f32 0.0, %v539
    %541 = vmatmul.f32.gmra.mxu0 %v497
    %v542 = vpop.f32.mrf.mxu0
    %v543 = vadd.f32 0.0, %v542
    %544 = vdwg.mxu0
    %v545 = vadd.f32 %v302, %v517
    %v546 = vadd.f32 %v432, %v540
    %v547 = vadd.f32 %v305, %v520
    %v548 = vadd.f32 %v435, %v543
    %v549 = vxor.u32 %v545, 2147483648
    %v550 = vxor.u32 %v546, 2147483648
    %v551 = vxor.u32 %v547, 2147483648
    %v552 = vxor.u32 %v548, 2147483648
    %v553 = vmul.f32 %v549, 1.442695
    %v554 = vpow.pop %v553
    %v555 = vmul.f32 %v550, 1.442695
    %v556 = vpow.pop %v555
    %v557 = vmul.f32 %v551, 1.442695
    %v558 = vpow.pop %v557
    %v559 = vmul.f32 %v552, 1.442695
    %v560 = vpow.pop %v559
    %v561 = vadd.f32 %v554, 1.0
    %v562 = vadd.f32 %v556, 1.0
    %v563 = vadd.f32 %v558, 1.0
    %v564 = vadd.f32 %v560, 1.0
    %v565 = vrcp.pop %v561
    %v566 = vmul.f32 %v561, %v565
    %v567 = vsub.f32 1.0, %v566
    %v568 = vmul.f32 %v565, %v567
    %v569 = vadd.f32 %v565, %v568
    %vm570 = vweird.f32 %v561
    %vm571 = vweird.f32 %v565
    %vm572 = vmor %vm570, %vm571
    %v573 = vsel %vm572, %v565, %v569
    %v574 = vand.u32 2147483647, %v561
    %vm575 = vcmp.eq.f32.partialorder %v574, 8.507059e+37
    %v576 = vand.u32 %v561, 2147483648
    %v577 = vor.u32 1.1754944e-38, %v576
    %v578 = vsel %vm575, %v577, %v573
    %v579 = vmul.f32 1.0, %v578
    %v580 = vrcp.pop %v562
    %v581 = vmul.f32 %v562, %v580
    %v582 = vsub.f32 1.0, %v581
    %v583 = vmul.f32 %v580, %v582
    %v584 = vadd.f32 %v580, %v583
    %vm585 = vweird.f32 %v562
    %vm586 = vweird.f32 %v580
    %vm587 = vmor %vm585, %vm586
    %v588 = vsel %vm587, %v580, %v584
    %v589 = vand.u32 2147483647, %v562
    %vm590 = vcmp.eq.f32.partialorder %v589, 8.507059e+37
    %v591 = vand.u32 %v562, 2147483648
    %v592 = vor.u32 1.1754944e-38, %v591
    %v593 = vsel %vm590, %v592, %v588
    %v594 = vmul.f32 1.0, %v593
    %v595 = vrcp.pop %v563
    %v596 = vmul.f32 %v563, %v595
    %v597 = vsub.f32 1.0, %v596
    %v598 = vmul.f32 %v595, %v597
    %v599 = vadd.f32 %v595, %v598
    %vm600 = vweird.f32 %v563
    %vm601 = vweird.f32 %v595
    %vm602 = vmor %vm600, %vm601
    %v603 = vsel %vm602, %v595, %v599
    %v604 = vand.u32 2147483647, %v563
    %vm605 = vcmp.eq.f32.partialorder %v604, 8.507059e+37
    %v606 = vand.u32 %v563, 2147483648
    %v607 = vor.u32 1.1754944e-38, %v606
    %v608 = vsel %vm605, %v607, %v603
    %v609 = vmul.f32 1.0, %v608
    %v610 = vrcp.pop %v564
    %v611 = vmul.f32 %v564, %v610
    %v612 = vsub.f32 1.0, %v611
    %v613 = vmul.f32 %v610, %v612
    %v614 = vadd.f32 %v610, %v613
    %vm615 = vweird.f32 %v564
    %vm616 = vweird.f32 %v610
    %vm617 = vmor %vm615, %vm616
    %v618 = vsel %vm617, %v610, %v614
    %v619 = vand.u32 2147483647, %v564
    %vm620 = vcmp.eq.f32.partialorder %v619, 8.507059e+37
    %v621 = vand.u32 %v564, 2147483648
    %v622 = vor.u32 1.1754944e-38, %v621
    %v623 = vsel %vm620, %v622, %v618
    %v624 = vmul.f32 1.0, %v623
    %v625 = vtanh.pop %v546
    %v626 = vtanh.pop %v548
    %v627 = vmul.f32 %v579, 0.0
    %v628 = vmul.f32 %v609, 0.0
    %631 = vrot.lane.b32.xlu0 %v625, 64
    %v632 = vpop.permute.xlu0 %631
    %633 = vrot.lane.b32.xlu0 %v626, 64
    %v634 = vpop.permute.xlu0 %633
    %v637 = vmul.f32 %v579, %v632
    %v638 = vmul.f32 %v609, %v634
    %641 = vrot.lane.b32.xlu0 %v637, 64
    %v642 = vpop.permute.xlu0 %641
    %643 = vrot.lane.b32.xlu0 %v638, 64
    %v644 = vpop.permute.xlu0 %643
    %v647 = vadd.f32 %v627, %v642
    %v648 = vadd.f32 %v628, %v644
    %v649 = vtanh.pop %v647
    %v650 = vtanh.pop %v648
    %653 = vrot.lane.b32.xlu0 %v649, 64
    %v654 = vpop.permute.xlu0 %653
    %655 = vrot.lane.b32.xlu0 %v650, 64
    %v656 = vpop.permute.xlu0 %655
    %v659 = vmul.f32 %v594, %v654
    %v660 = vmul.f32 %v624, %v656
    %v661 = vadd.f32 %v659, 0.0
    %v662 = vadd.f32 %v660, 0.0
    %v664 = vsel %vm495, %v659, 0
    %v667 = vsel %vm495, %v660, 0
    %669 = vmatpush.msra.mxu0 0.0
    %670 = vmatpush.msra.mxu0 0.0
    %671 = vmatpush.msra.mxu0 0.0
    %672 = vmatpush.msra.mxu0 0.0
    %673 = vmatpush.msra.mxu0 0.0
    %674 = vmatpush.msra.mxu0 0.0
    %675 = vmatpush.msra.mxu0 0.0
    %676 = vmatpush.msra.mxu0 0.0
    %677 = vmatpush.msra.mxu0 %v493
    %678 = vmatpush.msra.mxu0 %v491
    %679 = vmatpush.msra.mxu0 %v489
    %680 = vmatpush.msra.mxu0 %v487
    %681 = vmatpush.msra.mxu0 %v485
    %682 = vmatpush.msra.mxu0 %v483
    %683 = vmatpush.msra.mxu0 %v481
    %684 = vmatpush.msra.mxu0 %v479
    %685 = vmatmul.f32.gmra.mxu0 %v664
    %v686 = vpop.f32.mrf.mxu0
    %v687 = vadd.f32 0.0, %v686
    %688 = vmatmul.f32.gmra.mxu0 %v667
    %v689 = vpop.f32.mrf.mxu0
    %v690 = vadd.f32 0.0, %v689
    %691 = vdwg.mxu0
    %692 = vmatpush.msra.mxu0 0.0
    %693 = vmatpush.msra.mxu0 0.0
    %694 = vmatpush.msra.mxu0 0.0
    %695 = vmatpush.msra.mxu0 0.0
    %696 = vmatpush.msra.mxu0 0.0
    %697 = vmatpush.msra.mxu0 0.0
    %698 = vmatpush.msra.mxu0 0.0
    %699 = vmatpush.msra.mxu0 0.0
    %700 = vmatpush.msra.mxu0 %v494
    %701 = vmatpush.msra.mxu0 %v492
    %702 = vmatpush.msra.mxu0 %v490
    %703 = vmatpush.msra.mxu0 %v488
    %704 = vmatpush.msra.mxu0 %v486
    %705 = vmatpush.msra.mxu0 %v484
    %706 = vmatpush.msra.mxu0 %v482
    %707 = vmatpush.msra.mxu0 %v480
    %708 = vmatmul.f32.gmra.mxu0 %v664
    %v709 = vpop.f32.mrf.mxu0
    %v710 = vadd.f32 0.0, %v709
    %711 = vmatmul.f32.gmra.mxu0 %v667
    %v712 = vpop.f32.mrf.mxu0
    %v713 = vadd.f32 0.0, %v712
    %714 = vdwg.mxu0
    %v715 = vadd.f32 %v308, %v687
    %v716 = vadd.f32 %v438, %v710
    %v717 = vadd.f32 %v311, %v690
    %v718 = vadd.f32 %v441, %v713
    %v719 = vxor.u32 %v715, 2147483648
    %v720 = vxor.u32 %v716, 2147483648
    %v721 = vxor.u32 %v717, 2147483648
    %v722 = vxor.u32 %v718, 2147483648
    %v723 = vmul.f32 %v719, 1.442695
    %v724 = vpow.pop %v723
    %v725 = vmul.f32 %v720, 1.442695
    %v726 = vpow.pop %v725
    %v727 = vmul.f32 %v721, 1.442695
    %v728 = vpow.pop %v727
    %v729 = vmul.f32 %v722, 1.442695
    %v730 = vpow.pop %v729
    %v731 = vadd.f32 %v724, 1.0
    %v732 = vadd.f32 %v726, 1.0
    %v733 = vadd.f32 %v728, 1.0
    %v734 = vadd.f32 %v730, 1.0
    %v735 = vrcp.pop %v731
    %v736 = vmul.f32 %v731, %v735
    %v737 = vsub.f32 1.0, %v736
    %v738 = vmul.f32 %v735, %v737
    %v739 = vadd.f32 %v735, %v738
    %vm740 = vweird.f32 %v731
    %vm741 = vweird.f32 %v735
    %vm742 = vmor %vm740, %vm741
    %v743 = vsel %vm742, %v735, %v739
    %v744 = vand.u32 2147483647, %v731
    %vm745 = vcmp.eq.f32.partialorder %v744, 8.507059e+37
    %v746 = vand.u32 %v731, 2147483648
    %v747 = vor.u32 1.1754944e-38, %v746
    %v748 = vsel %vm745, %v747, %v743
    %v749 = vmul.f32 1.0, %v748
    %v750 = vrcp.pop %v732
    %v751 = vmul.f32 %v732, %v750
    %v752 = vsub.f32 1.0, %v751
    %v753 = vmul.f32 %v750, %v752
    %v754 = vadd.f32 %v750, %v753
    %vm755 = vweird.f32 %v732
    %vm756 = vweird.f32 %v750
    %vm757 = vmor %vm755, %vm756
    %v758 = vsel %vm757, %v750, %v754
    %v759 = vand.u32 2147483647, %v732
    %vm760 = vcmp.eq.f32.partialorder %v759, 8.507059e+37
    %v761 = vand.u32 %v732, 2147483648
    %v762 = vor.u32 1.1754944e-38, %v761
    %v763 = vsel %vm760, %v762, %v758
    %v764 = vmul.f32 1.0, %v763
    %v765 = vrcp.pop %v733
    %v766 = vmul.f32 %v733, %v765
    %v767 = vsub.f32 1.0, %v766
    %v768 = vmul.f32 %v765, %v767
    %v769 = vadd.f32 %v765, %v768
    %vm770 = vweird.f32 %v733
    %vm771 = vweird.f32 %v765
    %vm772 = vmor %vm770, %vm771
    %v773 = vsel %vm772, %v765, %v769
    %v774 = vand.u32 2147483647, %v733
    %vm775 = vcmp.eq.f32.partialorder %v774, 8.507059e+37
    %v776 = vand.u32 %v733, 2147483648
    %v777 = vor.u32 1.1754944e-38, %v776
    %v778 = vsel %vm775, %v777, %v773
    %v779 = vmul.f32 1.0, %v778
    %v780 = vrcp.pop %v734
    %v781 = vmul.f32 %v734, %v780
    %v782 = vsub.f32 1.0, %v781
    %v783 = vmul.f32 %v780, %v782
    %v784 = vadd.f32 %v780, %v783
    %vm785 = vweird.f32 %v734
    %vm786 = vweird.f32 %v780
    %vm787 = vmor %vm785, %vm786
    %v788 = vsel %vm787, %v780, %v784
    %v789 = vand.u32 2147483647, %v734
    %vm790 = vcmp.eq.f32.partialorder %v789, 8.507059e+37
    %v791 = vand.u32 %v734, 2147483648
    %v792 = vor.u32 1.1754944e-38, %v791
    %v793 = vsel %vm790, %v792, %v788
    %v794 = vmul.f32 1.0, %v793
    %v795 = vtanh.pop %v716
    %v796 = vtanh.pop %v718
    %v797 = vmul.f32 %v749, %v647
    %v798 = vmul.f32 %v779, %v648
    %801 = vrot.lane.b32.xlu0 %v795, 64
    %v802 = vpop.permute.xlu0 %801
    %803 = vrot.lane.b32.xlu0 %v796, 64
    %v804 = vpop.permute.xlu0 %803
    %v807 = vmul.f32 %v749, %v802
    %v808 = vmul.f32 %v779, %v804
    %811 = vrot.lane.b32.xlu0 %v807, 64
    %v812 = vpop.permute.xlu0 %811
    %813 = vrot.lane.b32.xlu0 %v808, 64
    %v814 = vpop.permute.xlu0 %813
    %v817 = vadd.f32 %v797, %v812
    %v818 = vadd.f32 %v798, %v814
    %v819 = vtanh.pop %v817
    %v820 = vtanh.pop %v818
    %823 = vrot.lane.b32.xlu0 %v819, 64
    %v824 = vpop.permute.xlu0 %823
    %825 = vrot.lane.b32.xlu0 %v820, 64
    %v826 = vpop.permute.xlu0 %825
    %v829 = vmul.f32 %v764, %v824
    %v830 = vmul.f32 %v794, %v826
    %v831 = vadd.f32 %v661, %v829
    %v832 = vadd.f32 %v662, %v830
    %v834 = vsel %vm495, %v829, 0
    %v837 = vsel %vm495, %v830, 0
    %839 = vmatpush.msra.mxu0 0.0
    %840 = vmatpush.msra.mxu0 0.0
    %841 = vmatpush.msra.mxu0 0.0
    %842 = vmatpush.msra.mxu0 0.0
    %843 = vmatpush.msra.mxu0 0.0
    %844 = vmatpush.msra.mxu0 0.0
    %845 = vmatpush.msra.mxu0 0.0
    %846 = vmatpush.msra.mxu0 0.0
    %847 = vmatpush.msra.mxu0 %v493
    %848 = vmatpush.msra.mxu0 %v491
    %849 = vmatpush.msra.mxu0 %v489
    %850 = vmatpush.msra.mxu0 %v487
    %851 = vmatpush.msra.mxu0 %v485
    %852 = vmatpush.msra.mxu0 %v483
    %853 = vmatpush.msra.mxu0 %v481
    %854 = vmatpush.msra.mxu0 %v479
    %855 = vmatmul.f32.gmra.mxu0 %v834
    %v856 = vpop.f32.mrf.mxu0
    %v857 = vadd.f32 0.0, %v856
    %858 = vmatmul.f32.gmra.mxu0 %v837
    %v859 = vpop.f32.mrf.mxu0
    %v860 = vadd.f32 0.0, %v859
    %861 = vdwg.mxu0
    %862 = vmatpush.msra.mxu0 0.0
    %863 = vmatpush.msra.mxu0 0.0
    %864 = vmatpush.msra.mxu0 0.0
    %865 = vmatpush.msra.mxu0 0.0
    %866 = vmatpush.msra.mxu0 0.0
    %867 = vmatpush.msra.mxu0 0.0
    %868 = vmatpush.msra.mxu0 0.0
    %869 = vmatpush.msra.mxu0 0.0
    %870 = vmatpush.msra.mxu0 %v494
    %871 = vmatpush.msra.mxu0 %v492
    %872 = vmatpush.msra.mxu0 %v490
    %873 = vmatpush.msra.mxu0 %v488
    %874 = vmatpush.msra.mxu0 %v486
    %875 = vmatpush.msra.mxu0 %v484
    %876 = vmatpush.msra.mxu0 %v482
    %877 = vmatpush.msra.mxu0 %v480
    %878 = vmatmul.f32.gmra.mxu0 %v834
    %v879 = vpop.f32.mrf.mxu0
    %v880 = vadd.f32 0.0, %v879
    %881 = vmatmul.f32.gmra.mxu0 %v837
    %v882 = vpop.f32.mrf.mxu0
    %v883 = vadd.f32 0.0, %v882
    %884 = vdwg.mxu0
    %v885 = vadd.f32 %v314, %v857
    %v886 = vadd.f32 %v444, %v880
    %v887 = vadd.f32 %v317, %v860
    %v888 = vadd.f32 %v447, %v883
    %v889 = vxor.u32 %v885, 2147483648
    %v890 = vxor.u32 %v886, 2147483648
    %v891 = vxor.u32 %v887, 2147483648
    %v892 = vxor.u32 %v888, 2147483648
    %v893 = vmul.f32 %v889, 1.442695
    %v894 = vpow.pop %v893
    %v895 = vmul.f32 %v890, 1.442695
    %v896 = vpow.pop %v895
    %v897 = vmul.f32 %v891, 1.442695
    %v898 = vpow.pop %v897
    %v899 = vmul.f32 %v892, 1.442695
    %v900 = vpow.pop %v899
    %v901 = vadd.f32 %v894, 1.0
    %v902 = vadd.f32 %v896, 1.0
    %v903 = vadd.f32 %v898, 1.0
    %v904 = vadd.f32 %v900, 1.0
    %v905 = vrcp.pop %v901
    %v906 = vmul.f32 %v901, %v905
    %v907 = vsub.f32 1.0, %v906
    %v908 = vmul.f32 %v905, %v907
    %v909 = vadd.f32 %v905, %v908
    %vm910 = vweird.f32 %v901
    %vm911 = vweird.f32 %v905
    %vm912 = vmor %vm910, %vm911
    %v913 = vsel %vm912, %v905, %v909
    %v914 = vand.u32 2147483647, %v901
    %vm915 = vcmp.eq.f32.partialorder %v914, 8.507059e+37
    %v916 = vand.u32 %v901, 2147483648
    %v917 = vor.u32 1.1754944e-38, %v916
    %v918 = vsel %vm915, %v917, %v913
    %v919 = vmul.f32 1.0, %v918
    %v920 = vrcp.pop %v902
    %v921 = vmul.f32 %v902, %v920
    %v922 = vsub.f32 1.0, %v921
    %v923 = vmul.f32 %v920, %v922
    %v924 = vadd.f32 %v920, %v923
    %vm925 = vweird.f32 %v902
    %vm926 = vweird.f32 %v920
    %vm927 = vmor %vm925, %vm926
    %v928 = vsel %vm927, %v920, %v924
    %v929 = vand.u32 2147483647, %v902
    %vm930 = vcmp.eq.f32.partialorder %v929, 8.507059e+37
    %v931 = vand.u32 %v902, 2147483648
    %v932 = vor.u32 1.1754944e-38, %v931
    %v933 = vsel %vm930, %v932, %v928
    %v934 = vmul.f32 1.0, %v933
    %v935 = vrcp.pop %v903
    %v936 = vmul.f32 %v903, %v935
    %v937 = vsub.f32 1.0, %v936
    %v938 = vmul.f32 %v935, %v937
    %v939 = vadd.f32 %v935, %v938
    %vm940 = vweird.f32 %v903
    %vm941 = vweird.f32 %v935
    %vm942 = vmor %vm940, %vm941
    %v943 = vsel %vm942, %v935, %v939
    %v944 = vand.u32 2147483647, %v903
    %vm945 = vcmp.eq.f32.partialorder %v944, 8.507059e+37
    %v946 = vand.u32 %v903, 2147483648
    %v947 = vor.u32 1.1754944e-38, %v946
    %v948 = vsel %vm945, %v947, %v943
    %v949 = vmul.f32 1.0, %v948
    %v950 = vrcp.pop %v904
    %v951 = vmul.f32 %v904, %v950
    %v952 = vsub.f32 1.0, %v951
    %v953 = vmul.f32 %v950, %v952
    %v954 = vadd.f32 %v950, %v953
    %vm955 = vweird.f32 %v904
    %vm956 = vweird.f32 %v950
    %vm957 = vmor %vm955, %vm956
    %v958 = vsel %vm957, %v950, %v954
    %v959 = vand.u32 2147483647, %v904
    %vm960 = vcmp.eq.f32.partialorder %v959, 8.507059e+37
    %v961 = vand.u32 %v904, 2147483648
    %v962 = vor.u32 1.1754944e-38, %v961
    %v963 = vsel %vm960, %v962, %v958
    %v964 = vmul.f32 1.0, %v963
    %v965 = vtanh.pop %v886
    %v966 = vtanh.pop %v888
    %v967 = vmul.f32 %v919, %v817
    %v968 = vmul.f32 %v949, %v818
    %971 = vrot.lane.b32.xlu0 %v965, 64
    %v972 = vpop.permute.xlu0 %971
    %973 = vrot.lane.b32.xlu0 %v966, 64
    %v974 = vpop.permute.xlu0 %973
    %v977 = vmul.f32 %v919, %v972
    %v978 = vmul.f32 %v949, %v974
    %981 = vrot.lane.b32.xlu0 %v977, 64
    %v982 = vpop.permute.xlu0 %981
    %983 = vrot.lane.b32.xlu0 %v978, 64
    %v984 = vpop.permute.xlu0 %983
    %v987 = vadd.f32 %v967, %v982
    %v988 = vadd.f32 %v968, %v984
    %v989 = vtanh.pop %v987
    %v990 = vtanh.pop %v988
    %993 = vrot.lane.b32.xlu0 %v989, 64
    %v994 = vpop.permute.xlu0 %993
    %995 = vrot.lane.b32.xlu0 %v990, 64
    %v996 = vpop.permute.xlu0 %995
    %v999 = vmul.f32 %v934, %v994
    %v1000 = vmul.f32 %v964, %v996
    %v1001 = vadd.f32 %v831, %v999
    %v1002 = vadd.f32 %v832, %v1000
    %v1004 = vsel %vm495, %v999, 0
    %v1007 = vsel %vm495, %v1000, 0
    %1009 = vmatpush.msra.mxu0 0.0
    %1010 = vmatpush.msra.mxu0 0.0
    %1011 = vmatpush.msra.mxu0 0.0
    %1012 = vmatpush.msra.mxu0 0.0
    %1013 = vmatpush.msra.mxu0 0.0
    %1014 = vmatpush.msra.mxu0 0.0
    %1015 = vmatpush.msra.mxu0 0.0
    %1016 = vmatpush.msra.mxu0 0.0
    %1017 = vmatpush.msra.mxu0 %v493
    %1018 = vmatpush.msra.mxu0 %v491
    %1019 = vmatpush.msra.mxu0 %v489
    %1020 = vmatpush.msra.mxu0 %v487
    %1021 = vmatpush.msra.mxu0 %v485
    %1022 = vmatpush.msra.mxu0 %v483
    %1023 = vmatpush.msra.mxu0 %v481
    %1024 = vmatpush.msra.mxu0 %v479
    %1025 = vmatmul.f32.gmra.mxu0 %v1004
    %v1026 = vpop.f32.mrf.mxu0
    %v1027 = vadd.f32 0.0, %v1026
    %1028 = vmatmul.f32.gmra.mxu0 %v1007
    %v1029 = vpop.f32.mrf.mxu0
    %v1030 = vadd.f32 0.0, %v1029
    %1031 = vdwg.mxu0
    %1032 = vmatpush.msra.mxu0 0.0
    %1033 = vmatpush.msra.mxu0 0.0
    %1034 = vmatpush.msra.mxu0 0.0
    %1035 = vmatpush.msra.mxu0 0.0
    %1036 = vmatpush.msra.mxu0 0.0
    %1037 = vmatpush.msra.mxu0 0.0
    %1038 = vmatpush.msra.mxu0 0.0
    %1039 = vmatpush.msra.mxu0 0.0
    %1040 = vmatpush.msra.mxu0 %v494
    %1041 = vmatpush.msra.mxu0 %v492
    %1042 = vmatpush.msra.mxu0 %v490
    %1043 = vmatpush.msra.mxu0 %v488
    %1044 = vmatpush.msra.mxu0 %v486
    %1045 = vmatpush.msra.mxu0 %v484
    %1046 = vmatpush.msra.mxu0 %v482
    %1047 = vmatpush.msra.mxu0 %v480
    %1048 = vmatmul.f32.gmra.mxu0 %v1004
    %v1049 = vpop.f32.mrf.mxu0
    %v1050 = vadd.f32 0.0, %v1049
    %1051 = vmatmul.f32.gmra.mxu0 %v1007
    %v1052 = vpop.f32.mrf.mxu0
    %v1053 = vadd.f32 0.0, %v1052
    %1054 = vdwg.mxu0
    %v1055 = vadd.f32 %v320, %v1027
    %v1056 = vadd.f32 %v450, %v1050
    %v1057 = vadd.f32 %v323, %v1030
    %v1058 = vadd.f32 %v453, %v1053
    %v1059 = vxor.u32 %v1055, 2147483648
    %v1060 = vxor.u32 %v1056, 2147483648
    %v1061 = vxor.u32 %v1057, 2147483648
    %v1062 = vxor.u32 %v1058, 2147483648
    %v1063 = vmul.f32 %v1059, 1.442695
    %v1064 = vpow.pop %v1063
    %v1065 = vmul.f32 %v1060, 1.442695
    %v1066 = vpow.pop %v1065
    %v1067 = vmul.f32 %v1061, 1.442695
    %v1068 = vpow.pop %v1067
    %v1069 = vmul.f32 %v1062, 1.442695
    %v1070 = vpow.pop %v1069
    %v1071 = vadd.f32 %v1064, 1.0
    %v1072 = vadd.f32 %v1066, 1.0
    %v1073 = vadd.f32 %v1068, 1.0
    %v1074 = vadd.f32 %v1070, 1.0
    %v1075 = vrcp.pop %v1071
    %v1076 = vmul.f32 %v1071, %v1075
    %v1077 = vsub.f32 1.0, %v1076
    %v1078 = vmul.f32 %v1075, %v1077
    %v1079 = vadd.f32 %v1075, %v1078
    %vm1080 = vweird.f32 %v1071
    %vm1081 = vweird.f32 %v1075
    %vm1082 = vmor %vm1080, %vm1081
    %v1083 = vsel %vm1082, %v1075, %v1079
    %v1084 = vand.u32 2147483647, %v1071
    %vm1085 = vcmp.eq.f32.partialorder %v1084, 8.507059e+37
    %v1086 = vand.u32 %v1071, 2147483648
    %v1087 = vor.u32 1.1754944e-38, %v1086
    %v1088 = vsel %vm1085, %v1087, %v1083
    %v1089 = vmul.f32 1.0, %v1088
    %v1090 = vrcp.pop %v1072
    %v1091 = vmul.f32 %v1072, %v1090
    %v1092 = vsub.f32 1.0, %v1091
    %v1093 = vmul.f32 %v1090, %v1092
    %v1094 = vadd.f32 %v1090, %v1093
    %vm1095 = vweird.f32 %v1072
    %vm1096 = vweird.f32 %v1090
    %vm1097 = vmor %vm1095, %vm1096
    %v1098 = vsel %vm1097, %v1090, %v1094
    %v1099 = vand.u32 2147483647, %v1072
    %vm1100 = vcmp.eq.f32.partialorder %v1099, 8.507059e+37
    %v1101 = vand.u32 %v1072, 2147483648
    %v1102 = vor.u32 1.1754944e-38, %v1101
    %v1103 = vsel %vm1100, %v1102, %v1098
    %v1104 = vmul.f32 1.0, %v1103
    %v1105 = vrcp.pop %v1073
    %v1106 = vmul.f32 %v1073, %v1105
    %v1107 = vsub.f32 1.0, %v1106
    %v1108 = vmul.f32 %v1105, %v1107
    %v1109 = vadd.f32 %v1105, %v1108
    %vm1110 = vweird.f32 %v1073
    %vm1111 = vweird.f32 %v1105
    %vm1112 = vmor %vm1110, %vm1111
    %v1113 = vsel %vm1112, %v1105, %v1109
    %v1114 = vand.u32 2147483647, %v1073
    %vm1115 = vcmp.eq.f32.partialorder %v1114, 8.507059e+37
    %v1116 = vand.u32 %v1073, 2147483648
    %v1117 = vor.u32 1.1754944e-38, %v1116
    %v1118 = vsel %vm1115, %v1117, %v1113
    %v1119 = vmul.f32 1.0, %v1118
    %v1120 = vrcp.pop %v1074
    %v1121 = vmul.f32 %v1074, %v1120
    %v1122 = vsub.f32 1.0, %v1121
    %v1123 = vmul.f32 %v1120, %v1122
    %v1124 = vadd.f32 %v1120, %v1123
    %vm1125 = vweird.f32 %v1074
    %vm1126 = vweird.f32 %v1120
    %vm1127 = vmor %vm1125, %vm1126
    %v1128 = vsel %vm1127, %v1120, %v1124
    %v1129 = vand.u32 2147483647, %v1074
    %vm1130 = vcmp.eq.f32.partialorder %v1129, 8.507059e+37
    %v1131 = vand.u32 %v1074, 2147483648
    %v1132 = vor.u32 1.1754944e-38, %v1131
    %v1133 = vsel %vm1130, %v1132, %v1128
    %v1134 = vmul.f32 1.0, %v1133
    %v1135 = vtanh.pop %v1056
    %v1136 = vtanh.pop %v1058
    %v1137 = vmul.f32 %v1089, %v987
    %v1138 = vmul.f32 %v1119, %v988
    %1141 = vrot.lane.b32.xlu0 %v1135, 64
    %v1142 = vpop.permute.xlu0 %1141
    %1143 = vrot.lane.b32.xlu0 %v1136, 64
    %v1144 = vpop.permute.xlu0 %1143
    %v1147 = vmul.f32 %v1089, %v1142
    %v1148 = vmul.f32 %v1119, %v1144
    %1151 = vrot.lane.b32.xlu0 %v1147, 64
    %v1152 = vpop.permute.xlu0 %1151
    %1153 = vrot.lane.b32.xlu0 %v1148, 64
    %v1154 = vpop.permute.xlu0 %1153
    %v1157 = vadd.f32 %v1137, %v1152
    %v1158 = vadd.f32 %v1138, %v1154
    %v1159 = vtanh.pop %v1157
    %v1160 = vtanh.pop %v1158
    %1163 = vrot.lane.b32.xlu0 %v1159, 64
    %v1164 = vpop.permute.xlu0 %1163
    %1165 = vrot.lane.b32.xlu0 %v1160, 64
    %v1166 = vpop.permute.xlu0 %1165
    %v1169 = vmul.f32 %v1104, %v1164
    %v1170 = vmul.f32 %v1134, %v1166
    %v1171 = vadd.f32 %v1001, %v1169
    %v1172 = vadd.f32 %v1002, %v1170
    %v1174 = vsel %vm495, %v1169, 0
    %v1177 = vsel %vm495, %v1170, 0
    %1179 = vmatpush.msra.mxu0 0.0
    %1180 = vmatpush.msra.mxu0 0.0
    %1181 = vmatpush.msra.mxu0 0.0
    %1182 = vmatpush.msra.mxu0 0.0
    %1183 = vmatpush.msra.mxu0 0.0
    %1184 = vmatpush.msra.mxu0 0.0
    %1185 = vmatpush.msra.mxu0 0.0
    %1186 = vmatpush.msra.mxu0 0.0
    %1187 = vmatpush.msra.mxu0 %v493
    %1188 = vmatpush.msra.mxu0 %v491
    %1189 = vmatpush.msra.mxu0 %v489
    %1190 = vmatpush.msra.mxu0 %v487
    %1191 = vmatpush.msra.mxu0 %v485
    %1192 = vmatpush.msra.mxu0 %v483
    %1193 = vmatpush.msra.mxu0 %v481
    %1194 = vmatpush.msra.mxu0 %v479
    %1195 = vmatmul.f32.gmra.mxu0 %v1174
    %v1196 = vpop.f32.mrf.mxu0
    %v1197 = vadd.f32 0.0, %v1196
    %1198 = vmatmul.f32.gmra.mxu0 %v1177
    %v1199 = vpop.f32.mrf.mxu0
    %v1200 = vadd.f32 0.0, %v1199
    %1201 = vdwg.mxu0
    %1202 = vmatpush.msra.mxu0 0.0
    %1203 = vmatpush.msra.mxu0 0.0
    %1204 = vmatpush.msra.mxu0 0.0
    %1205 = vmatpush.msra.mxu0 0.0
    %1206 = vmatpush.msra.mxu0 0.0
    %1207 = vmatpush.msra.mxu0 0.0
    %1208 = vmatpush.msra.mxu0 0.0
    %1209 = vmatpush.msra.mxu0 0.0
    %1210 = vmatpush.msra.mxu0 %v494
    %1211 = vmatpush.msra.mxu0 %v492
    %1212 = vmatpush.msra.mxu0 %v490
    %1213 = vmatpush.msra.mxu0 %v488
    %1214 = vmatpush.msra.mxu0 %v486
    %1215 = vmatpush.msra.mxu0 %v484
    %1216 = vmatpush.msra.mxu0 %v482
    %1217 = vmatpush.msra.mxu0 %v480
    %1218 = vmatmul.f32.gmra.mxu0 %v1174
    %v1219 = vpop.f32.mrf.mxu0
    %v1220 = vadd.f32 0.0, %v1219
    %1221 = vmatmul.f32.gmra.mxu0 %v1177
    %v1222 = vpop.f32.mrf.mxu0
    %v1223 = vadd.f32 0.0, %v1222
    %1224 = vdwg.mxu0
    %v1225 = vadd.f32 %v326, %v1197
    %v1226 = vadd.f32 %v456, %v1220
    %v1227 = vadd.f32 %v329, %v1200
    %v1228 = vadd.f32 %v459, %v1223
    %v1229 = vxor.u32 %v1225, 2147483648
    %v1230 = vxor.u32 %v1226, 2147483648
    %v1231 = vxor.u32 %v1227, 2147483648
    %v1232 = vxor.u32 %v1228, 2147483648
    %v1233 = vmul.f32 %v1229, 1.442695
    %v1234 = vpow.pop %v1233
    %v1235 = vmul.f32 %v1230, 1.442695
    %v1236 = vpow.pop %v1235
    %v1237 = vmul.f32 %v1231, 1.442695
    %v1238 = vpow.pop %v1237
    %v1239 = vmul.f32 %v1232, 1.442695
    %v1240 = vpow.pop %v1239
    %v1241 = vadd.f32 %v1234, 1.0
    %v1242 = vadd.f32 %v1236, 1.0
    %v1243 = vadd.f32 %v1238, 1.0
    %v1244 = vadd.f32 %v1240, 1.0
    %v1245 = vrcp.pop %v1241
    %v1246 = vmul.f32 %v1241, %v1245
    %v1247 = vsub.f32 1.0, %v1246
    %v1248 = vmul.f32 %v1245, %v1247
    %v1249 = vadd.f32 %v1245, %v1248
    %vm1250 = vweird.f32 %v1241
    %vm1251 = vweird.f32 %v1245
    %vm1252 = vmor %vm1250, %vm1251
    %v1253 = vsel %vm1252, %v1245, %v1249
    %v1254 = vand.u32 2147483647, %v1241
    %vm1255 = vcmp.eq.f32.partialorder %v1254, 8.507059e+37
    %v1256 = vand.u32 %v1241, 2147483648
    %v1257 = vor.u32 1.1754944e-38, %v1256
    %v1258 = vsel %vm1255, %v1257, %v1253
    %v1259 = vmul.f32 1.0, %v1258
    %v1260 = vrcp.pop %v1242
    %v1261 = vmul.f32 %v1242, %v1260
    %v1262 = vsub.f32 1.0, %v1261
    %v1263 = vmul.f32 %v1260, %v1262
    %v1264 = vadd.f32 %v1260, %v1263
    %vm1265 = vweird.f32 %v1242
    %vm1266 = vweird.f32 %v1260
    %vm1267 = vmor %vm1265, %vm1266
    %v1268 = vsel %vm1267, %v1260, %v1264
    %v1269 = vand.u32 2147483647, %v1242
    %vm1270 = vcmp.eq.f32.partialorder %v1269, 8.507059e+37
    %v1271 = vand.u32 %v1242, 2147483648
    %v1272 = vor.u32 1.1754944e-38, %v1271
    %v1273 = vsel %vm1270, %v1272, %v1268
    %v1274 = vmul.f32 1.0, %v1273
    %v1275 = vrcp.pop %v1243
    %v1276 = vmul.f32 %v1243, %v1275
    %v1277 = vsub.f32 1.0, %v1276
    %v1278 = vmul.f32 %v1275, %v1277
    %v1279 = vadd.f32 %v1275, %v1278
    %vm1280 = vweird.f32 %v1243
    %vm1281 = vweird.f32 %v1275
    %vm1282 = vmor %vm1280, %vm1281
    %v1283 = vsel %vm1282, %v1275, %v1279
    %v1284 = vand.u32 2147483647, %v1243
    %vm1285 = vcmp.eq.f32.partialorder %v1284, 8.507059e+37
    %v1286 = vand.u32 %v1243, 2147483648
    %v1287 = vor.u32 1.1754944e-38, %v1286
    %v1288 = vsel %vm1285, %v1287, %v1283
    %v1289 = vmul.f32 1.0, %v1288
    %v1290 = vrcp.pop %v1244
    %v1291 = vmul.f32 %v1244, %v1290
    %v1292 = vsub.f32 1.0, %v1291
    %v1293 = vmul.f32 %v1290, %v1292
    %v1294 = vadd.f32 %v1290, %v1293
    %vm1295 = vweird.f32 %v1244
    %vm1296 = vweird.f32 %v1290
    %vm1297 = vmor %vm1295, %vm1296
    %v1298 = vsel %vm1297, %v1290, %v1294
    %v1299 = vand.u32 2147483647, %v1244
    %vm1300 = vcmp.eq.f32.partialorder %v1299, 8.507059e+37
    %v1301 = vand.u32 %v1244, 2147483648
    %v1302 = vor.u32 1.1754944e-38, %v1301
    %v1303 = vsel %vm1300, %v1302, %v1298
    %v1304 = vmul.f32 1.0, %v1303
    %v1305 = vtanh.pop %v1226
    %v1306 = vtanh.pop %v1228
    %v1307 = vmul.f32 %v1259, %v1157
    %v1308 = vmul.f32 %v1289, %v1158
    %1311 = vrot.lane.b32.xlu0 %v1305, 64
    %v1312 = vpop.permute.xlu0 %1311
    %1313 = vrot.lane.b32.xlu0 %v1306, 64
    %v1314 = vpop.permute.xlu0 %1313
    %v1317 = vmul.f32 %v1259, %v1312
    %v1318 = vmul.f32 %v1289, %v1314
    %1321 = vrot.lane.b32.xlu0 %v1317, 64
    %v1322 = vpop.permute.xlu0 %1321
    %1323 = vrot.lane.b32.xlu0 %v1318, 64
    %v1324 = vpop.permute.xlu0 %1323
    %v1327 = vadd.f32 %v1307, %v1322
    %v1328 = vadd.f32 %v1308, %v1324
    %v1329 = vtanh.pop %v1327
    %v1330 = vtanh.pop %v1328
    %1333 = vrot.lane.b32.xlu0 %v1329, 64
    %v1334 = vpop.permute.xlu0 %1333
    %1335 = vrot.lane.b32.xlu0 %v1330, 64
    %v1336 = vpop.permute.xlu0 %1335
    %v1339 = vmul.f32 %v1274, %v1334
    %v1340 = vmul.f32 %v1304, %v1336
    %v1341 = vadd.f32 %v1171, %v1339
    %v1342 = vadd.f32 %v1172, %v1340
    %v1344 = vsel %vm495, %v1339, 0
    %v1347 = vsel %vm495, %v1340, 0
    %1349 = vmatpush.msra.mxu0 0.0
    %1350 = vmatpush.msra.mxu0 0.0
    %1351 = vmatpush.msra.mxu0 0.0
    %1352 = vmatpush.msra.mxu0 0.0
    %1353 = vmatpush.msra.mxu0 0.0
    %1354 = vmatpush.msra.mxu0 0.0
    %1355 = vmatpush.msra.mxu0 0.0
    %1356 = vmatpush.msra.mxu0 0.0
    %1357 = vmatpush.msra.mxu0 %v493
    %1358 = vmatpush.msra.mxu0 %v491
    %1359 = vmatpush.msra.mxu0 %v489
    %1360 = vmatpush.msra.mxu0 %v487
    %1361 = vmatpush.msra.mxu0 %v485
    %1362 = vmatpush.msra.mxu0 %v483
    %1363 = vmatpush.msra.mxu0 %v481
    %1364 = vmatpush.msra.mxu0 %v479
    %1365 = vmatmul.f32.gmra.mxu0 %v1344
    %v1366 = vpop.f32.mrf.mxu0
    %v1367 = vadd.f32 0.0, %v1366
    %1368 = vmatmul.f32.gmra.mxu0 %v1347
    %v1369 = vpop.f32.mrf.mxu0
    %v1370 = vadd.f32 0.0, %v1369
    %1371 = vdwg.mxu0
    %1372 = vmatpush.msra.mxu0 0.0
    %1373 = vmatpush.msra.mxu0 0.0
    %1374 = vmatpush.msra.mxu0 0.0
    %1375 = vmatpush.msra.mxu0 0.0
    %1376 = vmatpush.msra.mxu0 0.0
    %1377 = vmatpush.msra.mxu0 0.0
    %1378 = vmatpush.msra.mxu0 0.0
    %1379 = vmatpush.msra.mxu0 0.0
    %1380 = vmatpush.msra.mxu0 %v494
    %1381 = vmatpush.msra.mxu0 %v492
    %1382 = vmatpush.msra.mxu0 %v490
    %1383 = vmatpush.msra.mxu0 %v488
    %1384 = vmatpush.msra.mxu0 %v486
    %1385 = vmatpush.msra.mxu0 %v484
    %1386 = vmatpush.msra.mxu0 %v482
    %1387 = vmatpush.msra.mxu0 %v480
    %1388 = vmatmul.f32.gmra.mxu0 %v1344
    %v1389 = vpop.f32.mrf.mxu0
    %v1390 = vadd.f32 0.0, %v1389
    %1391 = vmatmul.f32.gmra.mxu0 %v1347
    %v1392 = vpop.f32.mrf.mxu0
    %v1393 = vadd.f32 0.0, %v1392
    %1394 = vdwg.mxu0
    %v1395 = vadd.f32 %v332, %v1367
    %v1396 = vadd.f32 %v462, %v1390
    %v1397 = vadd.f32 %v335, %v1370
    %v1398 = vadd.f32 %v465, %v1393
    %v1399 = vxor.u32 %v1395, 2147483648
    %v1400 = vxor.u32 %v1396, 2147483648
    %v1401 = vxor.u32 %v1397, 2147483648
    %v1402 = vxor.u32 %v1398, 2147483648
    %v1403 = vmul.f32 %v1399, 1.442695
    %v1404 = vpow.pop %v1403
    %v1405 = vmul.f32 %v1400, 1.442695
    %v1406 = vpow.pop %v1405
    %v1407 = vmul.f32 %v1401, 1.442695
    %v1408 = vpow.pop %v1407
    %v1409 = vmul.f32 %v1402, 1.442695
    %v1410 = vpow.pop %v1409
    %v1411 = vadd.f32 %v1404, 1.0
    %v1412 = vadd.f32 %v1406, 1.0
    %v1413 = vadd.f32 %v1408, 1.0
    %v1414 = vadd.f32 %v1410, 1.0
    %v1415 = vrcp.pop %v1411
    %v1416 = vmul.f32 %v1411, %v1415
    %v1417 = vsub.f32 1.0, %v1416
    %v1418 = vmul.f32 %v1415, %v1417
    %v1419 = vadd.f32 %v1415, %v1418
    %vm1420 = vweird.f32 %v1411
    %vm1421 = vweird.f32 %v1415
    %vm1422 = vmor %vm1420, %vm1421
    %v1423 = vsel %vm1422, %v1415, %v1419
    %v1424 = vand.u32 2147483647, %v1411
    %vm1425 = vcmp.eq.f32.partialorder %v1424, 8.507059e+37
    %v1426 = vand.u32 %v1411, 2147483648
    %v1427 = vor.u32 1.1754944e-38, %v1426
    %v1428 = vsel %vm1425, %v1427, %v1423
    %v1429 = vmul.f32 1.0, %v1428
    %v1430 = vrcp.pop %v1412
    %v1431 = vmul.f32 %v1412, %v1430
    %v1432 = vsub.f32 1.0, %v1431
    %v1433 = vmul.f32 %v1430, %v1432
    %v1434 = vadd.f32 %v1430, %v1433
    %vm1435 = vweird.f32 %v1412
    %vm1436 = vweird.f32 %v1430
    %vm1437 = vmor %vm1435, %vm1436
    %v1438 = vsel %vm1437, %v1430, %v1434
    %v1439 = vand.u32 2147483647, %v1412
    %vm1440 = vcmp.eq.f32.partialorder %v1439, 8.507059e+37
    %v1441 = vand.u32 %v1412, 2147483648
    %v1442 = vor.u32 1.1754944e-38, %v1441
    %v1443 = vsel %vm1440, %v1442, %v1438
    %v1444 = vmul.f32 1.0, %v1443
    %v1445 = vrcp.pop %v1413
    %v1446 = vmul.f32 %v1413, %v1445
    %v1447 = vsub.f32 1.0, %v1446
    %v1448 = vmul.f32 %v1445, %v1447
    %v1449 = vadd.f32 %v1445, %v1448
    %vm1450 = vweird.f32 %v1413
    %vm1451 = vweird.f32 %v1445
    %vm1452 = vmor %vm1450, %vm1451
    %v1453 = vsel %vm1452, %v1445, %v1449
    %v1454 = vand.u32 2147483647, %v1413
    %vm1455 = vcmp.eq.f32.partialorder %v1454, 8.507059e+37
    %v1456 = vand.u32 %v1413, 2147483648
    %v1457 = vor.u32 1.1754944e-38, %v1456
    %v1458 = vsel %vm1455, %v1457, %v1453
    %v1459 = vmul.f32 1.0, %v1458
    %v1460 = vrcp.pop %v1414
    %v1461 = vmul.f32 %v1414, %v1460
    %v1462 = vsub.f32 1.0, %v1461
    %v1463 = vmul.f32 %v1460, %v1462
    %v1464 = vadd.f32 %v1460, %v1463
    %vm1465 = vweird.f32 %v1414
    %vm1466 = vweird.f32 %v1460
    %vm1467 = vmor %vm1465, %vm1466
    %v1468 = vsel %vm1467, %v1460, %v1464
    %v1469 = vand.u32 2147483647, %v1414
    %vm1470 = vcmp.eq.f32.partialorder %v1469, 8.507059e+37
    %v1471 = vand.u32 %v1414, 2147483648
    %v1472 = vor.u32 1.1754944e-38, %v1471
    %v1473 = vsel %vm1470, %v1472, %v1468
    %v1474 = vmul.f32 1.0, %v1473
    %v1475 = vtanh.pop %v1396
    %v1476 = vtanh.pop %v1398
    %v1477 = vmul.f32 %v1429, %v1327
    %v1478 = vmul.f32 %v1459, %v1328
    %1481 = vrot.lane.b32.xlu0 %v1475, 64
    %v1482 = vpop.permute.xlu0 %1481
    %1483 = vrot.lane.b32.xlu0 %v1476, 64
    %v1484 = vpop.permute.xlu0 %1483
    %v1487 = vmul.f32 %v1429, %v1482
    %v1488 = vmul.f32 %v1459, %v1484
    %1491 = vrot.lane.b32.xlu0 %v1487, 64
    %v1492 = vpop.permute.xlu0 %1491
    %1493 = vrot.lane.b32.xlu0 %v1488, 64
    %v1494 = vpop.permute.xlu0 %1493
    %v1497 = vadd.f32 %v1477, %v1492
    %v1498 = vadd.f32 %v1478, %v1494
    %v1499 = vtanh.pop %v1497
    %v1500 = vtanh.pop %v1498
    %1503 = vrot.lane.b32.xlu0 %v1499, 64
    %v1504 = vpop.permute.xlu0 %1503
    %1505 = vrot.lane.b32.xlu0 %v1500, 64
    %v1506 = vpop.permute.xlu0 %1505
    %v1509 = vmul.f32 %v1444, %v1504
    %v1510 = vmul.f32 %v1474, %v1506
    %v1511 = vadd.f32 %v1341, %v1509
    %v1512 = vadd.f32 %v1342, %v1510
    %v1514 = vsel %vm495, %v1509, 0
    %v1517 = vsel %vm495, %v1510, 0
    %1519 = vmatpush.msra.mxu0 0.0
    %1520 = vmatpush.msra.mxu0 0.0
    %1521 = vmatpush.msra.mxu0 0.0
    %1522 = vmatpush.msra.mxu0 0.0
    %1523 = vmatpush.msra.mxu0 0.0
    %1524 = vmatpush.msra.mxu0 0.0
    %1525 = vmatpush.msra.mxu0 0.0
    %1526 = vmatpush.msra.mxu0 0.0
    %1527 = vmatpush.msra.mxu0 %v493
    %1528 = vmatpush.msra.mxu0 %v491
    %1529 = vmatpush.msra.mxu0 %v489
    %1530 = vmatpush.msra.mxu0 %v487
    %1531 = vmatpush.msra.mxu0 %v485
    %1532 = vmatpush.msra.mxu0 %v483
    %1533 = vmatpush.msra.mxu0 %v481
    %1534 = vmatpush.msra.mxu0 %v479
    %1535 = vmatmul.f32.gmra.mxu0 %v1514
    %v1536 = vpop.f32.mrf.mxu0
    %v1537 = vadd.f32 0.0, %v1536
    %1538 = vmatmul.f32.gmra.mxu0 %v1517
    %v1539 = vpop.f32.mrf.mxu0
    %v1540 = vadd.f32 0.0, %v1539
    %1541 = vdwg.mxu0
    %1542 = vmatpush.msra.mxu0 0.0
    %1543 = vmatpush.msra.mxu0 0.0
    %1544 = vmatpush.msra.mxu0 0.0
    %1545 = vmatpush.msra.mxu0 0.0
    %1546 = vmatpush.msra.mxu0 0.0
    %1547 = vmatpush.msra.mxu0 0.0
    %1548 = vmatpush.msra.mxu0 0.0
    %1549 = vmatpush.msra.mxu0 0.0
    %1550 = vmatpush.msra.mxu0 %v494
    %1551 = vmatpush.msra.mxu0 %v492
    %1552 = vmatpush.msra.mxu0 %v490
    %1553 = vmatpush.msra.mxu0 %v488
    %1554 = vmatpush.msra.mxu0 %v486
    %1555 = vmatpush.msra.mxu0 %v484
    %1556 = vmatpush.msra.mxu0 %v482
    %1557 = vmatpush.msra.mxu0 %v480
    %1558 = vmatmul.f32.gmra.mxu0 %v1514
    %v1559 = vpop.f32.mrf.mxu0
    %v1560 = vadd.f32 0.0, %v1559
    %1561 = vmatmul.f32.gmra.mxu0 %v1517
    %v1562 = vpop.f32.mrf.mxu0
    %v1563 = vadd.f32 0.0, %v1562
    %1564 = vdwg.mxu0
    %v1565 = vadd.f32 %v338, %v1537
    %v1566 = vadd.f32 %v468, %v1560
    %v1567 = vadd.f32 %v341, %v1540
    %v1568 = vadd.f32 %v471, %v1563
    %v1569 = vxor.u32 %v1565, 2147483648
    %v1570 = vxor.u32 %v1566, 2147483648
    %v1571 = vxor.u32 %v1567, 2147483648
    %v1572 = vxor.u32 %v1568, 2147483648
    %v1573 = vmul.f32 %v1569, 1.442695
    %v1574 = vpow.pop %v1573
    %v1575 = vmul.f32 %v1570, 1.442695
    %v1576 = vpow.pop %v1575
    %v1577 = vmul.f32 %v1571, 1.442695
    %v1578 = vpow.pop %v1577
    %v1579 = vmul.f32 %v1572, 1.442695
    %v1580 = vpow.pop %v1579
    %v1581 = vadd.f32 %v1574, 1.0
    %v1582 = vadd.f32 %v1576, 1.0
    %v1583 = vadd.f32 %v1578, 1.0
    %v1584 = vadd.f32 %v1580, 1.0
    %v1585 = vrcp.pop %v1581
    %v1586 = vmul.f32 %v1581, %v1585
    %v1587 = vsub.f32 1.0, %v1586
    %v1588 = vmul.f32 %v1585, %v1587
    %v1589 = vadd.f32 %v1585, %v1588
    %vm1590 = vweird.f32 %v1581
    %vm1591 = vweird.f32 %v1585
    %vm1592 = vmor %vm1590, %vm1591
    %v1593 = vsel %vm1592, %v1585, %v1589
    %v1594 = vand.u32 2147483647, %v1581
    %vm1595 = vcmp.eq.f32.partialorder %v1594, 8.507059e+37
    %v1596 = vand.u32 %v1581, 2147483648
    %v1597 = vor.u32 1.1754944e-38, %v1596
    %v1598 = vsel %vm1595, %v1597, %v1593
    %v1599 = vmul.f32 1.0, %v1598
    %v1600 = vrcp.pop %v1582
    %v1601 = vmul.f32 %v1582, %v1600
    %v1602 = vsub.f32 1.0, %v1601
    %v1603 = vmul.f32 %v1600, %v1602
    %v1604 = vadd.f32 %v1600, %v1603
    %vm1605 = vweird.f32 %v1582
    %vm1606 = vweird.f32 %v1600
    %vm1607 = vmor %vm1605, %vm1606
    %v1608 = vsel %vm1607, %v1600, %v1604
    %v1609 = vand.u32 2147483647, %v1582
    %vm1610 = vcmp.eq.f32.partialorder %v1609, 8.507059e+37
    %v1611 = vand.u32 %v1582, 2147483648
    %v1612 = vor.u32 1.1754944e-38, %v1611
    %v1613 = vsel %vm1610, %v1612, %v1608
    %v1614 = vmul.f32 1.0, %v1613
    %v1615 = vrcp.pop %v1583
    %v1616 = vmul.f32 %v1583, %v1615
    %v1617 = vsub.f32 1.0, %v1616
    %v1618 = vmul.f32 %v1615, %v1617
    %v1619 = vadd.f32 %v1615, %v1618
    %vm1620 = vweird.f32 %v1583
    %vm1621 = vweird.f32 %v1615
    %vm1622 = vmor %vm1620, %vm1621
    %v1623 = vsel %vm1622, %v1615, %v1619
    %v1624 = vand.u32 2147483647, %v1583
    %vm1625 = vcmp.eq.f32.partialorder %v1624, 8.507059e+37
    %v1626 = vand.u32 %v1583, 2147483648
    %v1627 = vor.u32 1.1754944e-38, %v1626
    %v1628 = vsel %vm1625, %v1627, %v1623
    %v1629 = vmul.f32 1.0, %v1628
    %v1630 = vrcp.pop %v1584
    %v1631 = vmul.f32 %v1584, %v1630
    %v1632 = vsub.f32 1.0, %v1631
    %v1633 = vmul.f32 %v1630, %v1632
    %v1634 = vadd.f32 %v1630, %v1633
    %vm1635 = vweird.f32 %v1584
    %vm1636 = vweird.f32 %v1630
    %vm1637 = vmor %vm1635, %vm1636
    %v1638 = vsel %vm1637, %v1630, %v1634
    %v1639 = vand.u32 2147483647, %v1584
    %vm1640 = vcmp.eq.f32.partialorder %v1639, 8.507059e+37
    %v1641 = vand.u32 %v1584, 2147483648
    %v1642 = vor.u32 1.1754944e-38, %v1641
    %v1643 = vsel %vm1640, %v1642, %v1638
    %v1644 = vmul.f32 1.0, %v1643
    %v1645 = vtanh.pop %v1566
    %v1646 = vtanh.pop %v1568
    %v1647 = vmul.f32 %v1599, %v1497
    %v1648 = vmul.f32 %v1629, %v1498
    %1651 = vrot.lane.b32.xlu0 %v1645, 64
    %v1652 = vpop.permute.xlu0 %1651
    %1653 = vrot.lane.b32.xlu0 %v1646, 64
    %v1654 = vpop.permute.xlu0 %1653
    %v1657 = vmul.f32 %v1599, %v1652
    %v1658 = vmul.f32 %v1629, %v1654
    %1661 = vrot.lane.b32.xlu0 %v1657, 64
    %v1662 = vpop.permute.xlu0 %1661
    %1663 = vrot.lane.b32.xlu0 %v1658, 64
    %v1664 = vpop.permute.xlu0 %1663
    %v1667 = vadd.f32 %v1647, %v1662
    %v1668 = vadd.f32 %v1648, %v1664
    %v1669 = vtanh.pop %v1667
    %v1670 = vtanh.pop %v1668
    %1673 = vrot.lane.b32.xlu0 %v1669, 64
    %v1674 = vpop.permute.xlu0 %1673
    %1675 = vrot.lane.b32.xlu0 %v1670, 64
    %v1676 = vpop.permute.xlu0 %1675
    %v1679 = vmul.f32 %v1614, %v1674
    %v1680 = vmul.f32 %v1644, %v1676
    %v1681 = vadd.f32 %v1511, %v1679
    %v1682 = vadd.f32 %v1512, %v1680
    %v1684 = vsel %vm495, %v1679, 0
    %v1687 = vsel %vm495, %v1680, 0
    %1689 = vmatpush.msra.mxu0 0.0
    %1690 = vmatpush.msra.mxu0 0.0
    %1691 = vmatpush.msra.mxu0 0.0
    %1692 = vmatpush.msra.mxu0 0.0
    %1693 = vmatpush.msra.mxu0 0.0
    %1694 = vmatpush.msra.mxu0 0.0
    %1695 = vmatpush.msra.mxu0 0.0
    %1696 = vmatpush.msra.mxu0 0.0
    %1697 = vmatpush.msra.mxu0 %v493
    %1698 = vmatpush.msra.mxu0 %v491
    %1699 = vmatpush.msra.mxu0 %v489
    %1700 = vmatpush.msra.mxu0 %v487
    %1701 = vmatpush.msra.mxu0 %v485
    %1702 = vmatpush.msra.mxu0 %v483
    %1703 = vmatpush.msra.mxu0 %v481
    %1704 = vmatpush.msra.mxu0 %v479
    %1705 = vmatmul.f32.gmra.mxu0 %v1684
    %v1706 = vpop.f32.mrf.mxu0
    %v1707 = vadd.f32 0.0, %v1706
    %1708 = vmatmul.f32.gmra.mxu0 %v1687
    %v1709 = vpop.f32.mrf.mxu0
    %v1710 = vadd.f32 0.0, %v1709
    %1711 = vdwg.mxu0
    %1712 = vmatpush.msra.mxu0 0.0
    %1713 = vmatpush.msra.mxu0 0.0
    %1714 = vmatpush.msra.mxu0 0.0
    %1715 = vmatpush.msra.mxu0 0.0
    %1716 = vmatpush.msra.mxu0 0.0
    %1717 = vmatpush.msra.mxu0 0.0
    %1718 = vmatpush.msra.mxu0 0.0
    %1719 = vmatpush.msra.mxu0 0.0
    %1720 = vmatpush.msra.mxu0 %v494
    %1721 = vmatpush.msra.mxu0 %v492
    %1722 = vmatpush.msra.mxu0 %v490
    %1723 = vmatpush.msra.mxu0 %v488
    %1724 = vmatpush.msra.mxu0 %v486
    %1725 = vmatpush.msra.mxu0 %v484
    %1726 = vmatpush.msra.mxu0 %v482
    %1727 = vmatpush.msra.mxu0 %v480
    %1728 = vmatmul.f32.gmra.mxu0 %v1684
    %v1729 = vpop.f32.mrf.mxu0
    %v1730 = vadd.f32 0.0, %v1729
    %1731 = vmatmul.f32.gmra.mxu0 %v1687
    %v1732 = vpop.f32.mrf.mxu0
    %v1733 = vadd.f32 0.0, %v1732
    %1734 = vdwg.mxu0
    %v1735 = vadd.f32 %v344, %v1707
    %v1736 = vadd.f32 %v474, %v1730
    %v1737 = vadd.f32 %v347, %v1710
    %v1738 = vadd.f32 %v477, %v1733
    %v1739 = vxor.u32 %v1735, 2147483648
    %v1740 = vxor.u32 %v1736, 2147483648
    %v1741 = vxor.u32 %v1737, 2147483648
    %v1742 = vxor.u32 %v1738, 2147483648
    %v1743 = vmul.f32 %v1739, 1.442695
    %v1744 = vpow.pop %v1743
    %v1745 = vmul.f32 %v1740, 1.442695
    %v1746 = vpow.pop %v1745
    %v1747 = vmul.f32 %v1741, 1.442695
    %v1748 = vpow.pop %v1747
    %v1749 = vmul.f32 %v1742, 1.442695
    %v1750 = vpow.pop %v1749
    %v1751 = vadd.f32 %v1744, 1.0
    %v1752 = vadd.f32 %v1746, 1.0
    %v1753 = vadd.f32 %v1748, 1.0
    %v1754 = vadd.f32 %v1750, 1.0
    %v1755 = vrcp.pop %v1751
    %v1756 = vmul.f32 %v1751, %v1755
    %v1757 = vsub.f32 1.0, %v1756
    %v1758 = vmul.f32 %v1755, %v1757
    %v1759 = vadd.f32 %v1755, %v1758
    %vm1760 = vweird.f32 %v1751
    %vm1761 = vweird.f32 %v1755
    %vm1762 = vmor %vm1760, %vm1761
    %v1763 = vsel %vm1762, %v1755, %v1759
    %v1764 = vand.u32 2147483647, %v1751
    %vm1765 = vcmp.eq.f32.partialorder %v1764, 8.507059e+37
    %v1766 = vand.u32 %v1751, 2147483648
    %v1767 = vor.u32 1.1754944e-38, %v1766
    %v1768 = vsel %vm1765, %v1767, %v1763
    %v1769 = vmul.f32 1.0, %v1768
    %v1770 = vrcp.pop %v1752
    %v1771 = vmul.f32 %v1752, %v1770
    %v1772 = vsub.f32 1.0, %v1771
    %v1773 = vmul.f32 %v1770, %v1772
    %v1774 = vadd.f32 %v1770, %v1773
    %vm1775 = vweird.f32 %v1752
    %vm1776 = vweird.f32 %v1770
    %vm1777 = vmor %vm1775, %vm1776
    %v1778 = vsel %vm1777, %v1770, %v1774
    %v1779 = vand.u32 2147483647, %v1752
    %vm1780 = vcmp.eq.f32.partialorder %v1779, 8.507059e+37
    %v1781 = vand.u32 %v1752, 2147483648
    %v1782 = vor.u32 1.1754944e-38, %v1781
    %v1783 = vsel %vm1780, %v1782, %v1778
    %v1784 = vmul.f32 1.0, %v1783
    %v1785 = vrcp.pop %v1753
    %v1786 = vmul.f32 %v1753, %v1785
    %v1787 = vsub.f32 1.0, %v1786
    %v1788 = vmul.f32 %v1785, %v1787
    %v1789 = vadd.f32 %v1785, %v1788
    %vm1790 = vweird.f32 %v1753
    %vm1791 = vweird.f32 %v1785
    %vm1792 = vmor %vm1790, %vm1791
    %v1793 = vsel %vm1792, %v1785, %v1789
    %v1794 = vand.u32 2147483647, %v1753
    %vm1795 = vcmp.eq.f32.partialorder %v1794, 8.507059e+37
    %v1796 = vand.u32 %v1753, 2147483648
    %v1797 = vor.u32 1.1754944e-38, %v1796
    %v1798 = vsel %vm1795, %v1797, %v1793
    %v1799 = vmul.f32 1.0, %v1798
    %v1800 = vrcp.pop %v1754
    %v1801 = vmul.f32 %v1754, %v1800
    %v1802 = vsub.f32 1.0, %v1801
    %v1803 = vmul.f32 %v1800, %v1802
    %v1804 = vadd.f32 %v1800, %v1803
    %vm1805 = vweird.f32 %v1754
    %vm1806 = vweird.f32 %v1800
    %vm1807 = vmor %vm1805, %vm1806
    %v1808 = vsel %vm1807, %v1800, %v1804
    %v1809 = vand.u32 2147483647, %v1754
    %vm1810 = vcmp.eq.f32.partialorder %v1809, 8.507059e+37
    %v1811 = vand.u32 %v1754, 2147483648
    %v1812 = vor.u32 1.1754944e-38, %v1811
    %v1813 = vsel %vm1810, %v1812, %v1808
    %v1814 = vmul.f32 1.0, %v1813
    %v1815 = vtanh.pop %v1736
    %v1816 = vtanh.pop %v1738
    %v1817 = vmul.f32 %v1769, %v1667
    %v1818 = vmul.f32 %v1799, %v1668
    %1821 = vrot.lane.b32.xlu0 %v1815, 64
    %v1822 = vpop.permute.xlu0 %1821
    %1823 = vrot.lane.b32.xlu0 %v1816, 64
    %v1824 = vpop.permute.xlu0 %1823
    %v1827 = vmul.f32 %v1769, %v1822
    %v1828 = vmul.f32 %v1799, %v1824
    %1831 = vrot.lane.b32.xlu0 %v1827, 64
    %v1832 = vpop.permute.xlu0 %1831
    %1833 = vrot.lane.b32.xlu0 %v1828, 64
    %v1834 = vpop.permute.xlu0 %1833
    %v1837 = vadd.f32 %v1817, %v1832
    %v1838 = vadd.f32 %v1818, %v1834
    %v1839 = vtanh.pop %v1837
    %v1840 = vtanh.pop %v1838
    %1843 = vrot.lane.b32.xlu0 %v1839, 64
    %v1844 = vpop.permute.xlu0 %1843
    %1845 = vrot.lane.b32.xlu0 %v1840, 64
    %v1846 = vpop.permute.xlu0 %1845
    %v1849 = vmul.f32 %v1784, %v1844
    %v1850 = vmul.f32 %v1814, %v1846
    %v1851 = vadd.f32 %v1681, %v1849
    %v1852 = vadd.f32 %v1682, %v1850
    %v1853 = vmul.f32 %v1851, 0.125
    %v1854 = vmul.f32 %v1852, 0.125
    %v1855 = vld [vmem:[%s4] sm:$0xff]
    %v1856 = vld [vmem:[%s4 + $0x8] sm:$0xff]
    %v1857 = vld [vmem:[%s4 + $0x10] sm:$0xff]
    %v1858 = vld [vmem:[%s4 + $0x18] sm:$0xff]
    %v1859 = vld [vmem:[%s4 + $0x20] sm:$0xff]
    %v1860 = vld [vmem:[%s4 + $0x28] sm:$0xff]
    %v1861 = vld [vmem:[%s4 + $0x30] sm:$0xff]
    %v1862 = vld [vmem:[%s4 + $0x38] sm:$0xff]
    %v1863 = vld [vmem:[%s5] sm:$0x1]
    %v1865 = vperm.slane %v1863, 0
    %v1868 = vsel %vm495, %v1853, 0
    %v1871 = vsel %vm495, %v1854, 0
    %1873 = vmatpush.msra.mxu0 0.0
    %1874 = vmatpush.msra.mxu0 0.0
    %1875 = vmatpush.msra.mxu0 0.0
    %1876 = vmatpush.msra.mxu0 0.0
    %1877 = vmatpush.msra.mxu0 0.0
    %1878 = vmatpush.msra.mxu0 0.0
    %1879 = vmatpush.msra.mxu0 0.0
    %1880 = vmatpush.msra.mxu0 0.0
    %1881 = vmatpush.msra.mxu0 %v1862
    %1882 = vmatpush.msra.mxu0 %v1861
    %1883 = vmatpush.msra.mxu0 %v1860
    %1884 = vmatpush.msra.mxu0 %v1859
    %1885 = vmatpush.msra.mxu0 %v1858
    %1886 = vmatpush.msra.mxu0 %v1857
    %1887 = vmatpush.msra.mxu0 %v1856
    %1888 = vmatpush.msra.mxu0 %v1855
    %1889 = vmatmul.f32.gmra.mxu0 %v1868
    %v1890 = vpop.f32.mrf.mxu0
    %v1891 = vadd.f32 %v1865, %v1890
    %1892 = vmatmul.f32.gmra.mxu0 %v1871
    %v1893 = vpop.f32.mrf.mxu0
    %v1894 = vadd.f32 %v1865, %v1893
    %1895 = vdwg.mxu0
    %vm1896 = vcmask 23552
    %1897 = vst.msk [vmem:[%s6] sm:$0xff] %vm1896, %v1891
    %1898 = vst.msk [vmem:[%s6 + $0x8] sm:$0xff] %vm1896, %v1894
    // Predicated region
    $region38: #{tpu_custom_call.1} parent=1 // pred_check
      _
    $region39: #{tpu_custom_call.1} parent=1 // pred_check_branch
      %1900 = sbr.rel (0) target = $region41
    $region40: #{tpu_custom_call.1} parent=1 // pred_region
      _
    $region41: #{tpu_custom_call.1} parent=1 // pred_fallthru
      _
    // Predicated region
    $region42: #{tpu_custom_call.1} parent=1 // pred_check
      _
    $region43: #{tpu_custom_call.1} parent=1 // pred_check_branch
      %1902 = sbr.rel (0) target = $region45
    $region44: #{tpu_custom_call.1} parent=1 // pred_region
      _
    $region45: #{tpu_custom_call.1} parent=1 // pred_fallthru
      _
    %1903 = vsyncpa [#allocation3], 1
    %1904 = vsyncpa [#allocation5], 1

</llo_original>
